<compile_context>
chip_gen: v5e
topology: v5e:2x2
jax: 0.10.0
libtpu: 0.0.40
codegen_flags: <defaults>
</compile_context>

<pallas_src>
import numpy as np

import jax
import jax.numpy as jnp
from jax.experimental import pallas as pl
from jax.experimental.pallas import tpu as pltpu

NEG_SLOPE = 0.01  # PyTorch LeakyReLU default negative_slope
LANE = 128
VMEM_LIMIT_BYTES = 32 * 1024 * 1024  # fits v5e/v6e (128 MiB) and v7x (64 MiB physical)


def _leaky_relu(x):
    return jnp.where(x > 0, x, NEG_SLOPE * x)


def cat_dense_kernel(idx_ref, tab_ref, w2_ref, b2_ref, out_ref):
    """(embedding + Linear1 + b1) via bf16 multi-hot MXU matmul -> LeakyReLU -> Linear2 -> LeakyReLU."""
    idx = idx_ref[...]                                   # (TB, F) int32, feature offsets baked in
    TB, F = idx.shape
    Vt = tab_ref.shape[0]                                # padded total vocab (multiple of 128)

    # Sublane-replicated lane iota (1, Vt); the compare broadcasts it over rows, so we never
    # materialize a (TB, Vt) int32 tile (lower vreg pressure at the larger batch tile).
    col = jax.lax.broadcasted_iota(jnp.int32, (1, Vt), 1)

    # Multi-hot LHS: feature offset ranges are disjoint, so a boolean OR across features
    # plus a single cast to bf16 gives exactly F ones per row (exact in bf16).
    hit = col == idx[:, 0:1]
    for f in range(1, F):                                # tiny static unroll over features
        hit = hit | (col == idx[:, f:f + 1])
    mhot = hit.astype(jnp.bfloat16)                      # (TB, Vt) bf16

    # Embedding lookup + first Linear (+ b1, pre-folded into the table) in one lane-dense
    # MXU matmul with f32 accumulation.
    h = jnp.dot(mhot, tab_ref[...], preferred_element_type=jnp.float32)
    h = _leaky_relu(h)                                   # (TB, H1) f32

    # Second Linear; output columns zero-padded to 128 -> unmasked lane-dense stores.
    o = jnp.dot(h.astype(jnp.bfloat16), w2_ref[...],
                preferred_element_type=jnp.float32) + b2_ref[...]
    # Elementwise math stays f32 (v5e VPU has no bf16 VALU); cast only at the store to
    # halve the dominant HBM writeback stream.
    out_ref[...] = _leaky_relu(o).astype(out_ref.dtype)


def categorical_dense_forward(idx_packed, fused_tab, w2p, b2p, *, block_b=512):
    """idx_packed: (B, F) int32 (per-feature offsets baked in); fused_tab: (Vt, H1) bf16
    (W1 and b1 folded in); w2p: (H1, H2_pad) bf16; b2p: (1, H2_pad) f32.

    Returns the lane-padded (B, H2_pad) bf16 output; the logical result is out[:, :H2]
    (leave the column slice to the consumer so it fuses instead of re-copying HBM)."""
    B, F = idx_packed.shape
    Vt, H1 = fused_tab.shape
    H2p = w2p.shape[1]

    # Pad batch to a multiple of the batch tile (padded rows reuse row 0 of each feature's
    # table and their outputs are discarded below — they are never meaningful).
    Bp = ((B + block_b - 1) // block_b) * block_b
    if Bp != B:
        idx_packed = jnp.pad(idx_packed, ((0, Bp - B), (0, 0)))

    # Explicit VMEM budget (default double-buffered blocks) against the scoped limit.
    # The resident fused table is the dominant term at production vocab sizes and is what
    # caps this design on v7x's 64 MiB VMEM (see TODO at top for the DMA-gather fallback).
    block_bytes = 2 * (block_b * F * 4        # idx blocks (int32)
                       + Vt * H1 * 2          # fused table (bf16), constant block index
                       + H1 * H2p * 2         # w2 (bf16), constant block index
                       + H2p * 4              # b2 (f32), constant block index
                       + block_b * H2p * 2)   # out blocks (bf16)
    assert block_bytes < VMEM_LIMIT_BYTES, (
        f"VMEM budget {block_bytes} B exceeds limit {VMEM_LIMIT_BYTES} B; "
        "shrink block_b or move the fused table to HBM (pl.ANY + DMA gather).")

    out = pl.pallas_call(
        cat_dense_kernel,
        out_shape=jax.ShapeDtypeStruct((Bp, H2p), jnp.bfloat16),
        grid=(Bp // block_b,),
        in_specs=[
            pl.BlockSpec((block_b, F), lambda i: (i, 0)),   # idx: blocked over batch
            pl.BlockSpec((Vt, H1), lambda i: (0, 0)),       # fused table (+W1,+b1): resident
            pl.BlockSpec((H1, H2p), lambda i: (0, 0)),      # w2 (padded): resident
            pl.BlockSpec((1, H2p), lambda i: (0, 0)),       # b2 (padded): resident
        ],
        out_specs=pl.BlockSpec((block_b, H2p), lambda i: (i, 0)),
        compiler_params=pltpu.CompilerParams(
            dimension_semantics=("parallel",),              # v7x megacore over batch tiles
            vmem_limit_bytes=VMEM_LIMIT_BYTES,
        ),
    )(idx_packed, fused_tab, w2p, b2p)

    return out if Bp == B else out[:B]


def prepare_fused_params(tables, w1, b1, w2, b2, embed_dim):
    """Fold W1 and b1 into the per-feature embedding tables; pad for lane-dense layouts."""
    F = len(tables)
    H1 = w1.shape[1]
    H2 = w2.shape[1]

    # Fold Linear1 into the tables; distribute b1/F onto every row (each multi-hot row has
    # exactly F ones, so the bias reassembles exactly). Done in f32, then one bf16 cast.
    fused = [tables[f] @ w1[f * embed_dim:(f + 1) * embed_dim, :] + b1.reshape(1, H1) / F
             for f in range(F)]
    offsets = np.cumsum([0] + [int(t.shape[0]) for t in tables[:-1]]).astype(np.int32)
    fused = jnp.concatenate(fused, axis=0)                       # (V_total, H1)
    v_total = fused.shape[0]
    vt_pad = ((v_total + LANE - 1) // LANE) * LANE
    fused = jnp.pad(fused, ((0, vt_pad - v_total), (0, 0))).astype(jnp.bfloat16)

    h2_pad = ((H2 + LANE - 1) // LANE) * LANE
    w2p = jnp.pad(w2, ((0, 0), (0, h2_pad - H2))).astype(jnp.bfloat16)
    b2p = jnp.pad(b2.reshape(1, H2), ((0, 0), (0, h2_pad - H2))).astype(jnp.float32)
    return fused, w2p, b2p, jnp.asarray(offsets, dtype=jnp.int32)


def pack_indices(x_dict, feat_names, vocab_size_dict, offsets):
    """Pack dict-of-(B,) int features into (B, F) with per-feature row offsets baked in.

    PyTorch nn.Embedding would raise on an out-of-range index; here we clamp defensively so
    an OOB index can never silently select another feature's rows in the packed table."""
    cols = []
    for f, name in enumerate(feat_names):
        v = vocab_size_dict[name]
        cols.append(jnp.clip(x_dict[name].astype(jnp.int32), 0, v - 1) + offsets[f])
    return jnp.stack(cols, axis=-1)


def reference_forward(idx, tables, w1, b1, w2, b2):
    """Pure-JAX reference mirroring the PyTorch forward (f32 throughout)."""
    F = idx.shape[1]
    embs = [jnp.take(tables[f], idx[:, f], axis=0) for f in range(F)]
    x = jnp.concatenate(embs, axis=-1)
    h = _leaky_relu(x @ w1 + b1.reshape(1, -1))
    return _leaky_relu(h @ w2 + b2.reshape(1, -1))


if __name__ == "__main__":
    # --- deterministic synthetic "module" construction -----------------------
    vocab_size_dict = {"user_id": 11, "item_id": 7, "category": 13}
    embed_dim = 8
    hidden_dims = [128, 64]
    batch = 1024        # 2 batch tiles at block_b=512: keeps the parallel axis >=2 (v7x megacore)
    block_b = 512

    feat_names = list(vocab_size_dict.keys())
    num_feats = len(feat_names)
    input_dim = embed_dim * num_feats

    key = jax.random.PRNGKey(0)
    k_tab, k_w1, k_b1, k_w2, k_b2, k_idx = jax.random.split(key, 6)

    # Per-feature embedding tables; row 0 zeroed to match padding_idx=0.
    tab_keys = jax.random.split(k_tab, num_feats)
    tables = []
    for f, name in enumerate(feat_names):
        v = vocab_size_dict[name]
        t = 0.1 * jax.random.normal(tab_keys[f], (v, embed_dim), jnp.float32)
        tables.append(t.at[0].set(0.0))

    # MLP params, stored (in, out) so y = x @ W + b (== PyTorch x @ weight.T + bias).
    w1 = 0.1 * jax.random.normal(k_w1, (input_dim, hidden_dims[0]), jnp.float32)
    b1 = 0.1 * jax.random.normal(k_b1, (hidden_dims[0],), jnp.float32)
    w2 = 0.1 * jax.random.normal(k_w2, (hidden_dims[0], hidden_dims[1]), jnp.float32)
    b2 = 0.1 * jax.random.normal(k_b2, (hidden_dims[1],), jnp.float32)

    # --- synthetic input: dict of (batch,) integer features -------------------
    idx_keys = jax.random.split(k_idx, num_feats)
    x_dict = {
        name: jax.random.randint(idx_keys[i], (batch,), 0, vocab_size_dict[name],
                                 dtype=jnp.int32)
        for i, name in enumerate(feat_names)
    }

    # --- fold W1/b1 into the tables, bake offsets into indices, run kernel ----
    fused_tab, w2p, b2p, offsets = prepare_fused_params(
        tables, w1, b1, w2, b2, embed_dim)
    idx_packed = pack_indices(x_dict, feat_names, vocab_size_dict, offsets)

    out_padded = categorical_dense_forward(idx_packed, fused_tab, w2p, b2p,
                                           block_b=block_b)
    out_padded = jax.block_until_ready(out_padded)
    assert out_padded.shape == (batch, LANE) and out_padded.dtype == jnp.bfloat16

    # Logical output = first hidden_dims[-1] columns (slice here for verification only).
    out = out_padded[:, :hidden_dims[-1]].astype(jnp.float32)

    idx = jnp.stack([x_dict[name] for name in feat_names], axis=-1)
    ref = reference_forward(idx, tables, w1, b1, w2, b2)
    assert out.shape == (batch, hidden_dims[-1])
    # bf16 matmul operands + bf16 folded bias/table + bf16 output store (f32 accumulation
    # throughout) -> compare at a correspondingly looser tolerance.
    assert jnp.allclose(out, ref, atol=3e-2, rtol=3e-2), "mismatch vs reference"

    print("KERNEL_OK")
</pallas_src>

<mosaic_0001>
module attributes {stable_mosaic.version = 11 : i64} {
  func.func @cat_dense_kernel(%arg0: i32, %arg1: memref<512x3xi32, #tpu.memory_space<vmem>>, %arg2: memref<128x128xbf16, #tpu.memory_space<vmem>>, %arg3: memref<128x128xbf16, #tpu.memory_space<vmem>>, %arg4: memref<1x128xf32, #tpu.memory_space<vmem>>, %arg5: memref<512x128xbf16, #tpu.memory_space<vmem>>) attributes {dimension_semantics = [#tpu.dimension_semantics<parallel>], iteration_bounds = array<i64: 2>, scalar_prefetch = 0 : i64, scratch_operands = 0 : i64, tpu.core_type = #tpu.core_type<tc>, window_params = [{transform_indices = @transform_0, window_bounds = array<i64: 512, 3>}, {pipeline_mode = #tpu.pipeline_mode<synchronous>, transform_indices = @transform_1, window_bounds = array<i64: 128, 128>}, {pipeline_mode = #tpu.pipeline_mode<synchronous>, transform_indices = @transform_2, window_bounds = array<i64: 128, 128>}, {pipeline_mode = #tpu.pipeline_mode<synchronous>, transform_indices = @transform_3, window_bounds = array<i64: 1, 128>}, {transform_indices = @transform_4, window_bounds = array<i64: 512, 128>}]} {
    %c0 = arith.constant 0 : index
    %c0_0 = arith.constant 0 : index
    %0 = vector.load %arg1[%c0, %c0_0] : memref<512x3xi32, #tpu.memory_space<vmem>>, vector<512x3xi32>
    %1 = tpu.iota {dimensions = array<i32: 1>} : vector<1x128xi32>
    %2 = vector.extract_strided_slice %0 {offsets = [0, 0], sizes = [512, 1], strides = [1, 1]} : vector<512x3xi32> to vector<512x1xi32>
    %3 = vector.broadcast %1 : vector<1x128xi32> to vector<512x128xi32>
    %4 = vector.broadcast %2 : vector<512x1xi32> to vector<512x128xi32>
    %5 = arith.cmpi eq, %3, %4 : vector<512x128xi32>
    %6 = vector.extract_strided_slice %0 {offsets = [0, 1], sizes = [512, 1], strides = [1, 1]} : vector<512x3xi32> to vector<512x1xi32>
    %7 = vector.broadcast %1 : vector<1x128xi32> to vector<512x128xi32>
    %8 = vector.broadcast %6 : vector<512x1xi32> to vector<512x128xi32>
    %9 = arith.cmpi eq, %7, %8 : vector<512x128xi32>
    %10 = arith.ori %5, %9 : vector<512x128xi1>
    %11 = vector.extract_strided_slice %0 {offsets = [0, 2], sizes = [512, 1], strides = [1, 1]} : vector<512x3xi32> to vector<512x1xi32>
    %12 = vector.broadcast %1 : vector<1x128xi32> to vector<512x128xi32>
    %13 = vector.broadcast %11 : vector<512x1xi32> to vector<512x128xi32>
    %14 = arith.cmpi eq, %12, %13 : vector<512x128xi32>
    %15 = arith.ori %10, %14 : vector<512x128xi1>
    %16 = arith.extui %15 : vector<512x128xi1> to vector<512x128xi32>
    %17 = arith.sitofp %16 : vector<512x128xi32> to vector<512x128xf32>
    %18 = arith.truncf %17 : vector<512x128xf32> to vector<512x128xbf16>
    %c0_1 = arith.constant 0 : index
    %c0_2 = arith.constant 0 : index
    %19 = vector.load %arg2[%c0_1, %c0_2] : memref<128x128xbf16, #tpu.memory_space<vmem>>, vector<128x128xbf16>
    %cst = arith.constant dense<0.000000e+00> : vector<512x128xf32>
    %20 = tpu.matmul %18, %19, %cst {dimension_numbers = #tpu.dot_dimension_numbers<[1], [0], [0], [1], [0, 0, 1, 1], [], []>} : vector<512x128xbf16>, vector<128x128xbf16>, vector<512x128xf32> -> vector<512x128xf32>
    %cst_3 = arith.constant 0.000000e+00 : f32
    %21 = vector.broadcast %cst_3 : f32 to vector<512x128xf32>
    %22 = arith.cmpf ogt, %20, %21 : vector<512x128xf32>
    %cst_4 = arith.constant 0.00999999977 : f32
    %23 = vector.broadcast %cst_4 : f32 to vector<512x128xf32>
    %24 = arith.mulf %23, %20 : vector<512x128xf32>
    %25 = arith.select %22, %20, %24 : vector<512x128xi1>, vector<512x128xf32>
    %26 = arith.truncf %25 : vector<512x128xf32> to vector<512x128xbf16>
    %c0_5 = arith.constant 0 : index
    %c0_6 = arith.constant 0 : index
    %27 = vector.load %arg3[%c0_5, %c0_6] : memref<128x128xbf16, #tpu.memory_space<vmem>>, vector<128x128xbf16>
    %cst_7 = arith.constant dense<0.000000e+00> : vector<512x128xf32>
    %28 = tpu.matmul %26, %27, %cst_7 {dimension_numbers = #tpu.dot_dimension_numbers<[1], [0], [0], [1], [0, 0, 1, 1], [], []>} : vector<512x128xbf16>, vector<128x128xbf16>, vector<512x128xf32> -> vector<512x128xf32>
    %c0_8 = arith.constant 0 : index
    %c0_9 = arith.constant 0 : index
    %29 = vector.load %arg4[%c0_8, %c0_9] : memref<1x128xf32, #tpu.memory_space<vmem>>, vector<1x128xf32>
    %30 = vector.broadcast %29 : vector<1x128xf32> to vector<512x128xf32>
    %31 = arith.addf %28, %30 : vector<512x128xf32>
    %cst_10 = arith.constant 0.000000e+00 : f32
    %32 = vector.broadcast %cst_10 : f32 to vector<512x128xf32>
    %33 = arith.cmpf ogt, %31, %32 : vector<512x128xf32>
    %cst_11 = arith.constant 0.00999999977 : f32
    %34 = vector.broadcast %cst_11 : f32 to vector<512x128xf32>
    %35 = arith.mulf %34, %31 : vector<512x128xf32>
    %36 = arith.select %33, %31, %35 : vector<512x128xi1>, vector<512x128xf32>
    %37 = arith.truncf %36 : vector<512x128xf32> to vector<512x128xbf16>
    %c0_12 = arith.constant 0 : index
    %c0_13 = arith.constant 0 : index
    %38 = vector.load %arg5[%c0_12, %c0_13] : memref<512x128xbf16, #tpu.memory_space<vmem>>, vector<512x128xbf16>
    tpu.vector_store %arg5[%c0_12, %c0_13], %37 {strides = array<i32>} : memref<512x128xbf16, #tpu.memory_space<vmem>>, vector<512x128xbf16>,
    return
  }
  func.func @transform_0(%arg0: i32) -> (i32, i32) {
    %c0_i32 = arith.constant 0 : i32
    %c0_i32_0 = arith.constant 0 : i32
    return %arg0, %c0_i32 : i32, i32
  }
  func.func @transform_1(%arg0: i32) -> (i32, i32) {
    %c0_i32 = arith.constant 0 : i32
    %c0_i32_0 = arith.constant 0 : i32
    %c0_i32_1 = arith.constant 0 : i32
    return %c0_i32, %c0_i32_0 : i32, i32
  }
  func.func @transform_2(%arg0: i32) -> (i32, i32) {
    %c0_i32 = arith.constant 0 : i32
    %c0_i32_0 = arith.constant 0 : i32
    %c0_i32_1 = arith.constant 0 : i32
    return %c0_i32, %c0_i32_0 : i32, i32
  }
  func.func @transform_3(%arg0: i32) -> (i32, i32) {
    %c0_i32 = arith.constant 0 : i32
    %c0_i32_0 = arith.constant 0 : i32
    %c0_i32_1 = arith.constant 0 : i32
    return %c0_i32, %c0_i32_0 : i32, i32
  }
  func.func @transform_4(%arg0: i32) -> (i32, i32) {
    %c0_i32 = arith.constant 0 : i32
    %c0_i32_0 = arith.constant 0 : i32
    return %arg0, %c0_i32 : i32, i32
  }
}

</mosaic_0001>

<llo_original>
// kernel: tpu_custom_call.1
$region0: #{tpu_custom_call.1}
  #allocation0 [shape = 'u32[]', space=smem, size = 0x4, offset = 0x4, fixed_abs, tag = 'smem constant byte address 0x4 - core index']
  #allocation1 [shape = 'u32[72,128]{1,0:T(1,128)}', space=vmem, size = 0x9000, scoped, tag = 'internal scratch']
  %s0 = inlined_call_operand.vmem [shape: s32[1024,3], index: 0, kind: input, shape index: {}]
  %s1 = inlined_call_operand.vmem [shape: bf16[128,128], index: 1, kind: input, shape index: {}]
  %s2 = inlined_call_operand.vmem [shape: bf16[128,128], index: 2, kind: input, shape index: {}]
  %s3 = inlined_call_operand.vmem [shape: f32[1,128], index: 3, kind: input, shape index: {}]
  %s4 = inlined_call_operand.hbm [shape: bf16[1024,128], index: 4, kind: output, shape index: {}]
  %s5 = sld [smem:[#allocation0]]
  $region49: #{tpu_custom_call.1} parent=0
    _
  %s7 = ssub.s32 1, %s5
  %s8 = scalar_select 0, %s7, %s5
  $region1: #{tpu_custom_call.1} parent=0
    #allocation2 [shape = 'u8[262144]{0}', space=vmem, size = 0x40000, scoped, tag = 'output window, operand 0']
    #allocation3 [shape = 's32[2]{0}', space=sflag, size = 0x8, scoped, tag = 'scoped memory for tpu_custom_call.1']
    %9 = vsyncpa [#allocation3], 0
    %s10 = scalar_lea.sflag [#allocation3], 1
    %11 = vsyncpa %s10, 0
    loop: start=0, step=1, limit=4
    $region2: #{tpu_custom_call.1} parent=1 // loop_pre_header
      _
    $region3: #{tpu_custom_call.1} parent=1 // loop_header
      %s13 = sphi 0, %s17
      %p14 = scmp.ge.s32.totalorder %s13, 4
      %s23 = sphi 0, %s25
      %s26 = sphi 0, %s23
      %s27 = sphi 0, %s26
      %s43 = sphi 0, %s27
      %s47 = sphi 0, %s47
      %s49 = sphi 0, %s47
      %s50 = sphi 0, %s49
      %s64 = sphi 0, %s50
      %s68 = sphi 0, %s68
      %s70 = sphi 0, %s68
      %s71 = sphi 0, %s70
      %s85 = sphi 0, %s71
      %s89 = sphi 0, %s89
      %s91 = sphi 0, %s89
      %s92 = sphi 0, %s91
      %s106 = sphi 0, %s92
      %s112 = sphi 0, %s114
      %s115 = sphi 0, %s112
      %s116 = sphi 0, %s115
      %s132 = sphi 0, %s116
    $region4: #{tpu_custom_call.1} parent=1 // loop_header_branch
      %16 = sbr.rel (%p14) target = $region8
    $region5: #{tpu_custom_call.1} parent=1 // loop_body
      %s18 = ssub.s32 %s13, 1
      %s19 = ssub.s32 %s13, 2
      %s20 = sadd.s32 %s13, 1
      %s21 = ssub.s32 %s13, %s20
      %p22 = scmp.eq.s32.totalorder %s21, 0
      %s24 = sadd.s32 %s23, 1
      %s25 = scalar_select %p22, %s23, %s24
      %p28 = pneg %p22
      %p29 = scmp.eq.s32.totalorder %s13, 1
      %p30 = por %p28, %p29
      %p31 = scmp.ne.s32.totalorder %s23, %s26
      %p32 = scmp.eq.s32.totalorder %s13, 0
      %p33 = por %p31, %p32
      %p34 = scmp.ne.s32.totalorder %s23, %s26
      %p35 = scmp.eq.s32.totalorder %s18, 1
      %p36 = por %p34, %p35
      %p37 = scmp.ne.s32.totalorder %s26, %s27
      %p38 = scmp.eq.s32.totalorder %s18, 0
      %p39 = por %p37, %p38
      %p40 = scmp.ne.s32.totalorder %s26, %s27
      %p41 = scmp.eq.s32.totalorder %s19, 1
      %p42 = por %p40, %p41
      %p44 = scmp.ne.s32.totalorder %s27, %s43
      %p45 = scmp.eq.s32.totalorder %s19, 0
      %p46 = por %p44, %p45
      %s48 = sadd.s32 %s47, 1
      %p51 = scmp.eq.s32.totalorder %s13, 1
      %p52 = scmp.ne.s32.totalorder %s47, %s49
      %p53 = scmp.eq.s32.totalorder %s13, 0
      %p54 = por %p52, %p53
      %p55 = scmp.ne.s32.totalorder %s47, %s49
      %p56 = scmp.eq.s32.totalorder %s18, 1
      %p57 = por %p55, %p56
      %p58 = scmp.ne.s32.totalorder %s49, %s50
      %p59 = scmp.eq.s32.totalorder %s18, 0
      %p60 = por %p58, %p59
      %p61 = scmp.ne.s32.totalorder %s49, %s50
      %p62 = scmp.eq.s32.totalorder %s19, 1
      %p63 = por %p61, %p62
      %p65 = scmp.ne.s32.totalorder %s50, %s64
      %p66 = scmp.eq.s32.totalorder %s19, 0
      %p67 = por %p65, %p66
      %s69 = sadd.s32 %s68, 1
      %p72 = scmp.eq.s32.totalorder %s13, 1
      %p73 = scmp.ne.s32.totalorder %s68, %s70
      %p74 = scmp.eq.s32.totalorder %s13, 0
      %p75 = por %p73, %p74
      %p76 = scmp.ne.s32.totalorder %s68, %s70
      %p77 = scmp.eq.s32.totalorder %s18, 1
      %p78 = por %p76, %p77
      %p79 = scmp.ne.s32.totalorder %s70, %s71
      %p80 = scmp.eq.s32.totalorder %s18, 0
      %p81 = por %p79, %p80
      %p82 = scmp.ne.s32.totalorder %s70, %s71
      %p83 = scmp.eq.s32.totalorder %s19, 1
      %p84 = por %p82, %p83
      %p86 = scmp.ne.s32.totalorder %s71, %s85
      %p87 = scmp.eq.s32.totalorder %s19, 0
      %p88 = por %p86, %p87
      %s90 = sadd.s32 %s89, 1
      %p93 = scmp.eq.s32.totalorder %s13, 1
      %p94 = scmp.ne.s32.totalorder %s89, %s91
      %p95 = scmp.eq.s32.totalorder %s13, 0
      %p96 = por %p94, %p95
      %p97 = scmp.ne.s32.totalorder %s89, %s91
      %p98 = scmp.eq.s32.totalorder %s18, 1
      %p99 = por %p97, %p98
      %p100 = scmp.ne.s32.totalorder %s91, %s92
      %p101 = scmp.eq.s32.totalorder %s18, 0
      %p102 = por %p100, %p101
      %p103 = scmp.ne.s32.totalorder %s91, %s92
      %p104 = scmp.eq.s32.totalorder %s19, 1
      %p105 = por %p103, %p104
      %p107 = scmp.ne.s32.totalorder %s92, %s106
      %p108 = scmp.eq.s32.totalorder %s19, 0
      %p109 = por %p107, %p108
      %s110 = ssub.s32 %s13, %s20
      %p111 = scmp.eq.s32.totalorder %s110, 0
      %s113 = sadd.s32 %s112, 1
      %s114 = scalar_select %p111, %s112, %s113
      %p117 = pneg %p111
      %p118 = scmp.eq.s32.totalorder %s13, 1
      %p119 = por %p117, %p118
      %p120 = scmp.ne.s32.totalorder %s112, %s115
      %p121 = scmp.eq.s32.totalorder %s13, 0
      %p122 = por %p120, %p121
      %p123 = scmp.ne.s32.totalorder %s112, %s115
      %p124 = scmp.eq.s32.totalorder %s18, 1
      %p125 = por %p123, %p124
      %p126 = scmp.ne.s32.totalorder %s115, %s116
      %p127 = scmp.eq.s32.totalorder %s18, 0
      %p128 = por %p126, %p127
      %p129 = scmp.ne.s32.totalorder %s115, %s116
      %p130 = scmp.eq.s32.totalorder %s19, 1
      %p131 = por %p129, %p130
      %p133 = scmp.ne.s32.totalorder %s116, %s132
      %p134 = scmp.eq.s32.totalorder %s19, 0
      %p135 = por %p133, %p134
      %p136 = scmp.le.s32.totalorder 1, %s13
      %p137 = scmp.lt.s32.totalorder %s13, 3
      %p138 = pnand %p136, %p137
      %p139 = pneg %p138
      // Predicated region
      $region9: #{tpu_custom_call.1} parent=5 // pred_check
        _
      $region10: #{tpu_custom_call.1} parent=5 // pred_check_branch
        %141 = sbr.rel (%p138) target = $region12
      $region11: #{tpu_custom_call.1} parent=5 // pred_region
        %s142 = ssub.s32 %s13, 1
        // Predicated region
        $region13: #{tpu_custom_call.1} parent=11 // pred_check
          %p143 = pneg %p60
        $region14: #{tpu_custom_call.1} parent=11 // pred_check_branch
          %145 = sbr.rel (%p143) target = $region16
        $region15: #{tpu_custom_call.1} parent=11 // pred_region
          _
        $region16: #{tpu_custom_call.1} parent=11 // pred_fallthru
          _
        // Predicated region
        $region17: #{tpu_custom_call.1} parent=11 // pred_check
          %p146 = pneg %p81
        $region18: #{tpu_custom_call.1} parent=11 // pred_check_branch
          %148 = sbr.rel (%p146) target = $region20
        $region19: #{tpu_custom_call.1} parent=11 // pred_region
          _
        $region20: #{tpu_custom_call.1} parent=11 // pred_fallthru
          _
        // Predicated region
        $region21: #{tpu_custom_call.1} parent=11 // pred_check
          %p149 = pneg %p102
        $region22: #{tpu_custom_call.1} parent=11 // pred_check_branch
          %151 = sbr.rel (%p149) target = $region24
        $region23: #{tpu_custom_call.1} parent=11 // pred_region
          _
        $region24: #{tpu_custom_call.1} parent=11 // pred_fallthru
          _
      $region12: #{tpu_custom_call.1} parent=5 // pred_fallthru
        _
      %p152 = scmp.lt.s32.totalorder %s13, 2
      // Predicated region
      $region25: #{tpu_custom_call.1} parent=5 // pred_check
        %p153 = pneg %p152
      $region26: #{tpu_custom_call.1} parent=5 // pred_check_branch
        %155 = sbr.rel (%p153) target = $region28
      $region27: #{tpu_custom_call.1} parent=5 // pred_region
        // Predicated region
        $region29: #{tpu_custom_call.1} parent=27 // pred_check
          %p156 = pneg %p33
        $region30: #{tpu_custom_call.1} parent=27 // pred_check_branch
          %158 = sbr.rel (%p156) target = $region32
        $region31: #{tpu_custom_call.1} parent=27 // pred_region
          %s159 = smul.u32 64, %s13
          %p160 = scmp.lt.s32.totalorder %s159, 127
          %s161 = scalar_select %p160, %s159, 127
          %s162 = smul.addr %s161, 8
          %s163 = scalar_lea.vmem %s0, %s162
          %s164 = smul.u32 64, %s13
        $region32: #{tpu_custom_call.1} parent=27 // pred_fallthru
          _
      $region28: #{tpu_custom_call.1} parent=5 // pred_fallthru
        _
      %p165 = scmp.le.s32.totalorder 1, %s13
      %p166 = scmp.lt.s32.totalorder %s13, 3
      %p167 = pnand %p165, %p166
      %p168 = pneg %p167
      // Predicated region
      $region33: #{tpu_custom_call.1} parent=5 // pred_check
        _
      $region34: #{tpu_custom_call.1} parent=5 // pred_check_branch
        %170 = sbr.rel (%p167) target = $region36
      $region35: #{tpu_custom_call.1} parent=5 // pred_region
        %s171 = ssub.s32 %s13, 1
        %s172 = smul.u32 64, %s18
        %p173 = scmp.lt.s32.totalorder %s172, 127
        %s174 = scalar_select %p173, %s172, 127
        %s175 = smul.addr %s174, 8
        %s176 = scalar_lea.vmem %s0, %s175
        %p177 = pneg %p39
        %p178 = pneg %p36
        %p179 = pneg %p60
        %p180 = pneg %p57
        %p181 = pneg %p81
        %p182 = pneg %p78
        %p183 = pneg %p102
        %p184 = pneg %p99
        %p185 = pneg %p128
        %p186 = pneg %p125
        %s187 = sand.u32 %s115, 1
        %s188 = scalar_lea.sflag [#allocation3], %s187
        %s189 = sand.u32 %s115, 1
        %s190 = smul.addr %s189, 256
        %s191 = scalar_lea.vmem [#allocation2], %s190
        %s192 = smul.u32 64, %s18
        %p193 = scmp.lt.s32.totalorder %s192, 127
        %s194 = scalar_select %p193, %s192, 127
        %s195 = smul.addr %s194, 8
        %s196 = scalar_lea.vmem %s0, %s195
        %s197 = smul.u32 64, %s18
        %s198 = smul.u32 64, %s18
        %v199 = vld [vmem:[%s196] sm:$0xff]
        %v200 = vld [vmem:[%s196 + $0x8] sm:$0xff]
        %v201 = vld [vmem:[%s196 + $0x10] sm:$0xff]
        %v202 = vld [vmem:[%s196 + $0x18] sm:$0xff]
        %v203 = vld [vmem:[%s196 + $0x20] sm:$0xff]
        %v204 = vld [vmem:[%s196 + $0x28] sm:$0xff]
        %v205 = vld [vmem:[%s196 + $0x30] sm:$0xff]
        %v206 = vld [vmem:[%s196 + $0x38] sm:$0xff]
        %v207 = vld [vmem:[%s196 + $0x40] sm:$0xff]
        %v208 = vld [vmem:[%s196 + $0x48] sm:$0xff]
        %v209 = vld [vmem:[%s196 + $0x50] sm:$0xff]
        %v210 = vld [vmem:[%s196 + $0x58] sm:$0xff]
        %v211 = vld [vmem:[%s196 + $0x60] sm:$0xff]
        %v212 = vld [vmem:[%s196 + $0x68] sm:$0xff]
        %v213 = vld [vmem:[%s196 + $0x70] sm:$0xff]
        %v214 = vld [vmem:[%s196 + $0x78] sm:$0xff]
        %v215 = vld [vmem:[%s196 + $0x80] sm:$0xff]
        %v216 = vld [vmem:[%s196 + $0x88] sm:$0xff]
        %v217 = vld [vmem:[%s196 + $0x90] sm:$0xff]
        %v218 = vld [vmem:[%s196 + $0x98] sm:$0xff]
        %v219 = vld [vmem:[%s196 + $0xa0] sm:$0xff]
        %v220 = vld [vmem:[%s196 + $0xa8] sm:$0xff]
        %v221 = vld [vmem:[%s196 + $0xb0] sm:$0xff]
        %v222 = vld [vmem:[%s196 + $0xb8] sm:$0xff]
        %v223 = vld [vmem:[%s196 + $0xc0] sm:$0xff]
        %v224 = vld [vmem:[%s196 + $0xc8] sm:$0xff]
        %v225 = vld [vmem:[%s196 + $0xd0] sm:$0xff]
        %v226 = vld [vmem:[%s196 + $0xd8] sm:$0xff]
        %v227 = vld [vmem:[%s196 + $0xe0] sm:$0xff]
        %v228 = vld [vmem:[%s196 + $0xe8] sm:$0xff]
        %v229 = vld [vmem:[%s196 + $0xf0] sm:$0xff]
        %v230 = vld [vmem:[%s196 + $0xf8] sm:$0xff]
        %v231 = vld [vmem:[%s196 + $0x100] sm:$0xff]
        %v232 = vld [vmem:[%s196 + $0x108] sm:$0xff]
        %v233 = vld [vmem:[%s196 + $0x110] sm:$0xff]
        %v234 = vld [vmem:[%s196 + $0x118] sm:$0xff]
        %v235 = vld [vmem:[%s196 + $0x120] sm:$0xff]
        %v236 = vld [vmem:[%s196 + $0x128] sm:$0xff]
        %v237 = vld [vmem:[%s196 + $0x130] sm:$0xff]
        %v238 = vld [vmem:[%s196 + $0x138] sm:$0xff]
        %v239 = vld [vmem:[%s196 + $0x140] sm:$0xff]
        %v240 = vld [vmem:[%s196 + $0x148] sm:$0xff]
        %v241 = vld [vmem:[%s196 + $0x150] sm:$0xff]
        %v242 = vld [vmem:[%s196 + $0x158] sm:$0xff]
        %v243 = vld [vmem:[%s196 + $0x160] sm:$0xff]
        %v244 = vld [vmem:[%s196 + $0x168] sm:$0xff]
        %v245 = vld [vmem:[%s196 + $0x170] sm:$0xff]
        %v246 = vld [vmem:[%s196 + $0x178] sm:$0xff]
        %v247 = vld [vmem:[%s196 + $0x180] sm:$0xff]
        %v248 = vld [vmem:[%s196 + $0x188] sm:$0xff]
        %v249 = vld [vmem:[%s196 + $0x190] sm:$0xff]
        %v250 = vld [vmem:[%s196 + $0x198] sm:$0xff]
        %v251 = vld [vmem:[%s196 + $0x1a0] sm:$0xff]
        %v252 = vld [vmem:[%s196 + $0x1a8] sm:$0xff]
        %v253 = vld [vmem:[%s196 + $0x1b0] sm:$0xff]
        %v254 = vld [vmem:[%s196 + $0x1b8] sm:$0xff]
        %v255 = vld [vmem:[%s196 + $0x1c0] sm:$0xff]
        %v256 = vld [vmem:[%s196 + $0x1c8] sm:$0xff]
        %v257 = vld [vmem:[%s196 + $0x1d0] sm:$0xff]
        %v258 = vld [vmem:[%s196 + $0x1d8] sm:$0xff]
        %v259 = vld [vmem:[%s196 + $0x1e0] sm:$0xff]
        %v260 = vld [vmem:[%s196 + $0x1e8] sm:$0xff]
        %v261 = vld [vmem:[%s196 + $0x1f0] sm:$0xff]
        %v262 = vld [vmem:[%s196 + $0x1f8] sm:$0xff]
        %v263 = vlaneseq
        %v264 = vand.u32 %v263, 127
        %265 = vset.pattern.permute.xlu0 0
        %266 = vperm.xlu0 %265, %v199
        %v267 = vpop.permute.xlu0 %266
        %268 = vset.pattern.permute.xlu0 0
        %269 = vperm.xlu0 %268, %v200
        %v270 = vpop.permute.xlu0 %269
        %271 = vset.pattern.permute.xlu0 0
        %272 = vperm.xlu0 %271, %v201
        %v273 = vpop.permute.xlu0 %272
        %274 = vset.pattern.permute.xlu0 0
        %275 = vperm.xlu0 %274, %v202
        %v276 = vpop.permute.xlu0 %275
        %277 = vset.pattern.permute.xlu0 0
        %278 = vperm.xlu0 %277, %v203
        %v279 = vpop.permute.xlu0 %278
        %280 = vset.pattern.permute.xlu0 0
        %281 = vperm.xlu0 %280, %v204
        %v282 = vpop.permute.xlu0 %281
        %283 = vset.pattern.permute.xlu0 0
        %284 = vperm.xlu0 %283, %v205
        %v285 = vpop.permute.xlu0 %284
        %286 = vset.pattern.permute.xlu0 0
        %287 = vperm.xlu0 %286, %v206
        %v288 = vpop.permute.xlu0 %287
        %289 = vset.pattern.permute.xlu0 0
        %290 = vperm.xlu0 %289, %v207
        %v291 = vpop.permute.xlu0 %290
        %292 = vset.pattern.permute.xlu0 0
        %293 = vperm.xlu0 %292, %v208
        %v294 = vpop.permute.xlu0 %293
        %295 = vset.pattern.permute.xlu0 0
        %296 = vperm.xlu0 %295, %v209
        %v297 = vpop.permute.xlu0 %296
        %298 = vset.pattern.permute.xlu0 0
        %299 = vperm.xlu0 %298, %v210
        %v300 = vpop.permute.xlu0 %299
        %301 = vset.pattern.permute.xlu0 0
        %302 = vperm.xlu0 %301, %v211
        %v303 = vpop.permute.xlu0 %302
        %304 = vset.pattern.permute.xlu0 0
        %305 = vperm.xlu0 %304, %v212
        %v306 = vpop.permute.xlu0 %305
        %307 = vset.pattern.permute.xlu0 0
        %308 = vperm.xlu0 %307, %v213
        %v309 = vpop.permute.xlu0 %308
        %310 = vset.pattern.permute.xlu0 0
        %311 = vperm.xlu0 %310, %v214
        %v312 = vpop.permute.xlu0 %311
        %313 = vset.pattern.permute.xlu0 0
        %314 = vperm.xlu0 %313, %v215
        %v315 = vpop.permute.xlu0 %314
        %316 = vset.pattern.permute.xlu0 0
        %317 = vperm.xlu0 %316, %v216
        %v318 = vpop.permute.xlu0 %317
        %319 = vset.pattern.permute.xlu0 0
        %320 = vperm.xlu0 %319, %v217
        %v321 = vpop.permute.xlu0 %320
        %322 = vset.pattern.permute.xlu0 0
        %323 = vperm.xlu0 %322, %v218
        %v324 = vpop.permute.xlu0 %323
        %325 = vset.pattern.permute.xlu0 0
        %326 = vperm.xlu0 %325, %v219
        %v327 = vpop.permute.xlu0 %326
        %328 = vset.pattern.permute.xlu0 0
        %329 = vperm.xlu0 %328, %v220
        %v330 = vpop.permute.xlu0 %329
        %331 = vset.pattern.permute.xlu0 0
        %332 = vperm.xlu0 %331, %v221
        %v333 = vpop.permute.xlu0 %332
        %334 = vset.pattern.permute.xlu0 0
        %335 = vperm.xlu0 %334, %v222
        %v336 = vpop.permute.xlu0 %335
        %337 = vset.pattern.permute.xlu0 0
        %338 = vperm.xlu0 %337, %v223
        %v339 = vpop.permute.xlu0 %338
        %340 = vset.pattern.permute.xlu0 0
        %341 = vperm.xlu0 %340, %v224
        %v342 = vpop.permute.xlu0 %341
        %343 = vset.pattern.permute.xlu0 0
        %344 = vperm.xlu0 %343, %v225
        %v345 = vpop.permute.xlu0 %344
        %346 = vset.pattern.permute.xlu0 0
        %347 = vperm.xlu0 %346, %v226
        %v348 = vpop.permute.xlu0 %347
        %349 = vset.pattern.permute.xlu0 0
        %350 = vperm.xlu0 %349, %v227
        %v351 = vpop.permute.xlu0 %350
        %352 = vset.pattern.permute.xlu0 0
        %353 = vperm.xlu0 %352, %v228
        %v354 = vpop.permute.xlu0 %353
        %355 = vset.pattern.permute.xlu0 0
        %356 = vperm.xlu0 %355, %v229
        %v357 = vpop.permute.xlu0 %356
        %358 = vset.pattern.permute.xlu0 0
        %359 = vperm.xlu0 %358, %v230
        %v360 = vpop.permute.xlu0 %359
        %361 = vset.pattern.permute.xlu0 0
        %362 = vperm.xlu0 %361, %v231
        %v363 = vpop.permute.xlu0 %362
        %364 = vset.pattern.permute.xlu0 0
        %365 = vperm.xlu0 %364, %v232
        %v366 = vpop.permute.xlu0 %365
        %367 = vset.pattern.permute.xlu0 0
        %368 = vperm.xlu0 %367, %v233
        %v369 = vpop.permute.xlu0 %368
        %370 = vset.pattern.permute.xlu0 0
        %371 = vperm.xlu0 %370, %v234
        %v372 = vpop.permute.xlu0 %371
        %373 = vset.pattern.permute.xlu0 0
        %374 = vperm.xlu0 %373, %v235
        %v375 = vpop.permute.xlu0 %374
        %376 = vset.pattern.permute.xlu0 0
        %377 = vperm.xlu0 %376, %v236
        %v378 = vpop.permute.xlu0 %377
        %379 = vset.pattern.permute.xlu0 0
        %380 = vperm.xlu0 %379, %v237
        %v381 = vpop.permute.xlu0 %380
        %382 = vset.pattern.permute.xlu0 0
        %383 = vperm.xlu0 %382, %v238
        %v384 = vpop.permute.xlu0 %383
        %385 = vset.pattern.permute.xlu0 0
        %386 = vperm.xlu0 %385, %v239
        %v387 = vpop.permute.xlu0 %386
        %388 = vset.pattern.permute.xlu0 0
        %389 = vperm.xlu0 %388, %v240
        %v390 = vpop.permute.xlu0 %389
        %391 = vset.pattern.permute.xlu0 0
        %392 = vperm.xlu0 %391, %v241
        %v393 = vpop.permute.xlu0 %392
        %394 = vset.pattern.permute.xlu0 0
        %395 = vperm.xlu0 %394, %v242
        %v396 = vpop.permute.xlu0 %395
        %397 = vset.pattern.permute.xlu0 0
        %398 = vperm.xlu0 %397, %v243
        %v399 = vpop.permute.xlu0 %398
        %400 = vset.pattern.permute.xlu0 0
        %401 = vperm.xlu0 %400, %v244
        %v402 = vpop.permute.xlu0 %401
        %403 = vset.pattern.permute.xlu0 0
        %404 = vperm.xlu0 %403, %v245
        %v405 = vpop.permute.xlu0 %404
        %406 = vset.pattern.permute.xlu0 0
        %407 = vperm.xlu0 %406, %v246
        %v408 = vpop.permute.xlu0 %407
        %409 = vset.pattern.permute.xlu0 0
        %410 = vperm.xlu0 %409, %v247
        %v411 = vpop.permute.xlu0 %410
        %412 = vset.pattern.permute.xlu0 0
        %413 = vperm.xlu0 %412, %v248
        %v414 = vpop.permute.xlu0 %413
        %415 = vset.pattern.permute.xlu0 0
        %416 = vperm.xlu0 %415, %v249
        %v417 = vpop.permute.xlu0 %416
        %418 = vset.pattern.permute.xlu0 0
        %419 = vperm.xlu0 %418, %v250
        %v420 = vpop.permute.xlu0 %419
        %421 = vset.pattern.permute.xlu0 0
        %422 = vperm.xlu0 %421, %v251
        %v423 = vpop.permute.xlu0 %422
        %424 = vset.pattern.permute.xlu0 0
        %425 = vperm.xlu0 %424, %v252
        %v426 = vpop.permute.xlu0 %425
        %427 = vset.pattern.permute.xlu0 0
        %428 = vperm.xlu0 %427, %v253
        %v429 = vpop.permute.xlu0 %428
        %430 = vset.pattern.permute.xlu0 0
        %431 = vperm.xlu0 %430, %v254
        %v432 = vpop.permute.xlu0 %431
        %433 = vset.pattern.permute.xlu0 0
        %434 = vperm.xlu0 %433, %v255
        %v435 = vpop.permute.xlu0 %434
        %436 = vset.pattern.permute.xlu0 0
        %437 = vperm.xlu0 %436, %v256
        %v438 = vpop.permute.xlu0 %437
        %439 = vset.pattern.permute.xlu0 0
        %440 = vperm.xlu0 %439, %v257
        %v441 = vpop.permute.xlu0 %440
        %442 = vset.pattern.permute.xlu0 0
        %443 = vperm.xlu0 %442, %v258
        %v444 = vpop.permute.xlu0 %443
        %445 = vset.pattern.permute.xlu0 0
        %446 = vperm.xlu0 %445, %v259
        %v447 = vpop.permute.xlu0 %446
        %448 = vset.pattern.permute.xlu0 0
        %449 = vperm.xlu0 %448, %v260
        %v450 = vpop.permute.xlu0 %449
        %451 = vset.pattern.permute.xlu0 0
        %452 = vperm.xlu0 %451, %v261
        %v453 = vpop.permute.xlu0 %452
        %454 = vset.pattern.permute.xlu0 0
        %455 = vperm.xlu0 %454, %v262
        %v456 = vpop.permute.xlu0 %455
        %vm457 = vcmp.eq.s32.totalorder %v264, %v267
        %vm458 = vcmp.eq.s32.totalorder %v264, %v270
        %vm459 = vcmp.eq.s32.totalorder %v264, %v273
        %vm460 = vcmp.eq.s32.totalorder %v264, %v276
        %vm461 = vcmp.eq.s32.totalorder %v264, %v279
        %vm462 = vcmp.eq.s32.totalorder %v264, %v282
        %vm463 = vcmp.eq.s32.totalorder %v264, %v285
        %vm464 = vcmp.eq.s32.totalorder %v264, %v288
        %vm465 = vcmp.eq.s32.totalorder %v264, %v291
        %vm466 = vcmp.eq.s32.totalorder %v264, %v294
        %vm467 = vcmp.eq.s32.totalorder %v264, %v297
        %vm468 = vcmp.eq.s32.totalorder %v264, %v300
        %vm469 = vcmp.eq.s32.totalorder %v264, %v303
        %vm470 = vcmp.eq.s32.totalorder %v264, %v306
        %vm471 = vcmp.eq.s32.totalorder %v264, %v309
        %vm472 = vcmp.eq.s32.totalorder %v264, %v312
        %vm473 = vcmp.eq.s32.totalorder %v264, %v315
        %vm474 = vcmp.eq.s32.totalorder %v264, %v318
        %vm475 = vcmp.eq.s32.totalorder %v264, %v321
        %vm476 = vcmp.eq.s32.totalorder %v264, %v324
        %vm477 = vcmp.eq.s32.totalorder %v264, %v327
        %vm478 = vcmp.eq.s32.totalorder %v264, %v330
        %vm479 = vcmp.eq.s32.totalorder %v264, %v333
        %vm480 = vcmp.eq.s32.totalorder %v264, %v336
        %vm481 = vcmp.eq.s32.totalorder %v264, %v339
        %vm482 = vcmp.eq.s32.totalorder %v264, %v342
        %vm483 = vcmp.eq.s32.totalorder %v264, %v345
        %vm484 = vcmp.eq.s32.totalorder %v264, %v348
        %vm485 = vcmp.eq.s32.totalorder %v264, %v351
        %vm486 = vcmp.eq.s32.totalorder %v264, %v354
        %vm487 = vcmp.eq.s32.totalorder %v264, %v357
        %vm488 = vcmp.eq.s32.totalorder %v264, %v360
        %vm489 = vcmp.eq.s32.totalorder %v264, %v363
        %vm490 = vcmp.eq.s32.totalorder %v264, %v366
        %vm491 = vcmp.eq.s32.totalorder %v264, %v369
        %vm492 = vcmp.eq.s32.totalorder %v264, %v372
        %vm493 = vcmp.eq.s32.totalorder %v264, %v375
        %vm494 = vcmp.eq.s32.totalorder %v264, %v378
        %vm495 = vcmp.eq.s32.totalorder %v264, %v381
        %vm496 = vcmp.eq.s32.totalorder %v264, %v384
        %vm497 = vcmp.eq.s32.totalorder %v264, %v387
        %vm498 = vcmp.eq.s32.totalorder %v264, %v390
        %vm499 = vcmp.eq.s32.totalorder %v264, %v393
        %vm500 = vcmp.eq.s32.totalorder %v264, %v396
        %vm501 = vcmp.eq.s32.totalorder %v264, %v399
        %vm502 = vcmp.eq.s32.totalorder %v264, %v402
        %vm503 = vcmp.eq.s32.totalorder %v264, %v405
        %vm504 = vcmp.eq.s32.totalorder %v264, %v408
        %vm505 = vcmp.eq.s32.totalorder %v264, %v411
        %vm506 = vcmp.eq.s32.totalorder %v264, %v414
        %vm507 = vcmp.eq.s32.totalorder %v264, %v417
        %vm508 = vcmp.eq.s32.totalorder %v264, %v420
        %vm509 = vcmp.eq.s32.totalorder %v264, %v423
        %vm510 = vcmp.eq.s32.totalorder %v264, %v426
        %vm511 = vcmp.eq.s32.totalorder %v264, %v429
        %vm512 = vcmp.eq.s32.totalorder %v264, %v432
        %vm513 = vcmp.eq.s32.totalorder %v264, %v435
        %vm514 = vcmp.eq.s32.totalorder %v264, %v438
        %vm515 = vcmp.eq.s32.totalorder %v264, %v441
        %vm516 = vcmp.eq.s32.totalorder %v264, %v444
        %vm517 = vcmp.eq.s32.totalorder %v264, %v447
        %vm518 = vcmp.eq.s32.totalorder %v264, %v450
        %vm519 = vcmp.eq.s32.totalorder %v264, %v453
        %vm520 = vcmp.eq.s32.totalorder %v264, %v456
        %521 = vset.pattern.permute.xlu0 1
        %522 = vperm.xlu0 %521, %v199
        %v523 = vpop.permute.xlu0 %522
        %524 = vset.pattern.permute.xlu0 1
        %525 = vperm.xlu0 %524, %v200
        %v526 = vpop.permute.xlu0 %525
        %527 = vset.pattern.permute.xlu0 1
        %528 = vperm.xlu0 %527, %v201
        %v529 = vpop.permute.xlu0 %528
        %530 = vset.pattern.permute.xlu0 1
        %531 = vperm.xlu0 %530, %v202
        %v532 = vpop.permute.xlu0 %531
        %533 = vset.pattern.permute.xlu0 1
        %534 = vperm.xlu0 %533, %v203
        %v535 = vpop.permute.xlu0 %534
        %536 = vset.pattern.permute.xlu0 1
        %537 = vperm.xlu0 %536, %v204
        %v538 = vpop.permute.xlu0 %537
        %539 = vset.pattern.permute.xlu0 1
        %540 = vperm.xlu0 %539, %v205
        %v541 = vpop.permute.xlu0 %540
        %542 = vset.pattern.permute.xlu0 1
        %543 = vperm.xlu0 %542, %v206
        %v544 = vpop.permute.xlu0 %543
        %545 = vset.pattern.permute.xlu0 1
        %546 = vperm.xlu0 %545, %v207
        %v547 = vpop.permute.xlu0 %546
        %548 = vset.pattern.permute.xlu0 1
        %549 = vperm.xlu0 %548, %v208
        %v550 = vpop.permute.xlu0 %549
        %551 = vset.pattern.permute.xlu0 1
        %552 = vperm.xlu0 %551, %v209
        %v553 = vpop.permute.xlu0 %552
        %554 = vset.pattern.permute.xlu0 1
        %555 = vperm.xlu0 %554, %v210
        %v556 = vpop.permute.xlu0 %555
        %557 = vset.pattern.permute.xlu0 1
        %558 = vperm.xlu0 %557, %v211
        %v559 = vpop.permute.xlu0 %558
        %560 = vset.pattern.permute.xlu0 1
        %561 = vperm.xlu0 %560, %v212
        %v562 = vpop.permute.xlu0 %561
        %563 = vset.pattern.permute.xlu0 1
        %564 = vperm.xlu0 %563, %v213
        %v565 = vpop.permute.xlu0 %564
        %566 = vset.pattern.permute.xlu0 1
        %567 = vperm.xlu0 %566, %v214
        %v568 = vpop.permute.xlu0 %567
        %569 = vset.pattern.permute.xlu0 1
        %570 = vperm.xlu0 %569, %v215
        %v571 = vpop.permute.xlu0 %570
        %572 = vset.pattern.permute.xlu0 1
        %573 = vperm.xlu0 %572, %v216
        %v574 = vpop.permute.xlu0 %573
        %575 = vset.pattern.permute.xlu0 1
        %576 = vperm.xlu0 %575, %v217
        %v577 = vpop.permute.xlu0 %576
        %578 = vset.pattern.permute.xlu0 1
        %579 = vperm.xlu0 %578, %v218
        %v580 = vpop.permute.xlu0 %579
        %581 = vset.pattern.permute.xlu0 1
        %582 = vperm.xlu0 %581, %v219
        %v583 = vpop.permute.xlu0 %582
        %584 = vset.pattern.permute.xlu0 1
        %585 = vperm.xlu0 %584, %v220
        %v586 = vpop.permute.xlu0 %585
        %587 = vset.pattern.permute.xlu0 1
        %588 = vperm.xlu0 %587, %v221
        %v589 = vpop.permute.xlu0 %588
        %590 = vset.pattern.permute.xlu0 1
        %591 = vperm.xlu0 %590, %v222
        %v592 = vpop.permute.xlu0 %591
        %593 = vset.pattern.permute.xlu0 1
        %594 = vperm.xlu0 %593, %v223
        %v595 = vpop.permute.xlu0 %594
        %596 = vset.pattern.permute.xlu0 1
        %597 = vperm.xlu0 %596, %v224
        %v598 = vpop.permute.xlu0 %597
        %599 = vset.pattern.permute.xlu0 1
        %600 = vperm.xlu0 %599, %v225
        %v601 = vpop.permute.xlu0 %600
        %602 = vset.pattern.permute.xlu0 1
        %603 = vperm.xlu0 %602, %v226
        %v604 = vpop.permute.xlu0 %603
        %605 = vset.pattern.permute.xlu0 1
        %606 = vperm.xlu0 %605, %v227
        %v607 = vpop.permute.xlu0 %606
        %608 = vset.pattern.permute.xlu0 1
        %609 = vperm.xlu0 %608, %v228
        %v610 = vpop.permute.xlu0 %609
        %611 = vset.pattern.permute.xlu0 1
        %612 = vperm.xlu0 %611, %v229
        %v613 = vpop.permute.xlu0 %612
        %614 = vset.pattern.permute.xlu0 1
        %615 = vperm.xlu0 %614, %v230
        %v616 = vpop.permute.xlu0 %615
        %617 = vset.pattern.permute.xlu0 1
        %618 = vperm.xlu0 %617, %v231
        %v619 = vpop.permute.xlu0 %618
        %620 = vset.pattern.permute.xlu0 1
        %621 = vperm.xlu0 %620, %v232
        %v622 = vpop.permute.xlu0 %621
        %623 = vset.pattern.permute.xlu0 1
        %624 = vperm.xlu0 %623, %v233
        %v625 = vpop.permute.xlu0 %624
        %626 = vset.pattern.permute.xlu0 1
        %627 = vperm.xlu0 %626, %v234
        %v628 = vpop.permute.xlu0 %627
        %629 = vset.pattern.permute.xlu0 1
        %630 = vperm.xlu0 %629, %v235
        %v631 = vpop.permute.xlu0 %630
        %632 = vset.pattern.permute.xlu0 1
        %633 = vperm.xlu0 %632, %v236
        %v634 = vpop.permute.xlu0 %633
        %635 = vset.pattern.permute.xlu0 1
        %636 = vperm.xlu0 %635, %v237
        %v637 = vpop.permute.xlu0 %636
        %638 = vset.pattern.permute.xlu0 1
        %639 = vperm.xlu0 %638, %v238
        %v640 = vpop.permute.xlu0 %639
        %641 = vset.pattern.permute.xlu0 1
        %642 = vperm.xlu0 %641, %v239
        %v643 = vpop.permute.xlu0 %642
        %644 = vset.pattern.permute.xlu0 1
        %645 = vperm.xlu0 %644, %v240
        %v646 = vpop.permute.xlu0 %645
        %647 = vset.pattern.permute.xlu0 1
        %648 = vperm.xlu0 %647, %v241
        %v649 = vpop.permute.xlu0 %648
        %650 = vset.pattern.permute.xlu0 1
        %651 = vperm.xlu0 %650, %v242
        %v652 = vpop.permute.xlu0 %651
        %653 = vset.pattern.permute.xlu0 1
        %654 = vperm.xlu0 %653, %v243
        %v655 = vpop.permute.xlu0 %654
        %656 = vset.pattern.permute.xlu0 1
        %657 = vperm.xlu0 %656, %v244
        %v658 = vpop.permute.xlu0 %657
        %659 = vset.pattern.permute.xlu0 1
        %660 = vperm.xlu0 %659, %v245
        %v661 = vpop.permute.xlu0 %660
        %662 = vset.pattern.permute.xlu0 1
        %663 = vperm.xlu0 %662, %v246
        %v664 = vpop.permute.xlu0 %663
        %665 = vset.pattern.permute.xlu0 1
        %666 = vperm.xlu0 %665, %v247
        %v667 = vpop.permute.xlu0 %666
        %668 = vset.pattern.permute.xlu0 1
        %669 = vperm.xlu0 %668, %v248
        %v670 = vpop.permute.xlu0 %669
        %671 = vset.pattern.permute.xlu0 1
        %672 = vperm.xlu0 %671, %v249
        %v673 = vpop.permute.xlu0 %672
        %674 = vset.pattern.permute.xlu0 1
        %675 = vperm.xlu0 %674, %v250
        %v676 = vpop.permute.xlu0 %675
        %677 = vset.pattern.permute.xlu0 1
        %678 = vperm.xlu0 %677, %v251
        %v679 = vpop.permute.xlu0 %678
        %680 = vset.pattern.permute.xlu0 1
        %681 = vperm.xlu0 %680, %v252
        %v682 = vpop.permute.xlu0 %681
        %683 = vset.pattern.permute.xlu0 1
        %684 = vperm.xlu0 %683, %v253
        %v685 = vpop.permute.xlu0 %684
        %686 = vset.pattern.permute.xlu0 1
        %687 = vperm.xlu0 %686, %v254
        %v688 = vpop.permute.xlu0 %687
        %689 = vset.pattern.permute.xlu0 1
        %690 = vperm.xlu0 %689, %v255
        %v691 = vpop.permute.xlu0 %690
        %692 = vset.pattern.permute.xlu0 1
        %693 = vperm.xlu0 %692, %v256
        %v694 = vpop.permute.xlu0 %693
        %695 = vset.pattern.permute.xlu0 1
        %696 = vperm.xlu0 %695, %v257
        %v697 = vpop.permute.xlu0 %696
        %698 = vset.pattern.permute.xlu0 1
        %699 = vperm.xlu0 %698, %v258
        %v700 = vpop.permute.xlu0 %699
        %701 = vset.pattern.permute.xlu0 1
        %702 = vperm.xlu0 %701, %v259
        %v703 = vpop.permute.xlu0 %702
        %704 = vset.pattern.permute.xlu0 1
        %705 = vperm.xlu0 %704, %v260
        %v706 = vpop.permute.xlu0 %705
        %707 = vset.pattern.permute.xlu0 1
        %708 = vperm.xlu0 %707, %v261
        %v709 = vpop.permute.xlu0 %708
        %710 = vset.pattern.permute.xlu0 1
        %711 = vperm.xlu0 %710, %v262
        %v712 = vpop.permute.xlu0 %711
        %vm713 = vcmp.eq.s32.totalorder %v264, %v523
        %vm714 = vcmp.eq.s32.totalorder %v264, %v526
        %vm715 = vcmp.eq.s32.totalorder %v264, %v529
        %vm716 = vcmp.eq.s32.totalorder %v264, %v532
        %vm717 = vcmp.eq.s32.totalorder %v264, %v535
        %vm718 = vcmp.eq.s32.totalorder %v264, %v538
        %vm719 = vcmp.eq.s32.totalorder %v264, %v541
        %vm720 = vcmp.eq.s32.totalorder %v264, %v544
        %vm721 = vcmp.eq.s32.totalorder %v264, %v547
        %vm722 = vcmp.eq.s32.totalorder %v264, %v550
        %vm723 = vcmp.eq.s32.totalorder %v264, %v553
        %vm724 = vcmp.eq.s32.totalorder %v264, %v556
        %vm725 = vcmp.eq.s32.totalorder %v264, %v559
        %vm726 = vcmp.eq.s32.totalorder %v264, %v562
        %vm727 = vcmp.eq.s32.totalorder %v264, %v565
        %vm728 = vcmp.eq.s32.totalorder %v264, %v568
        %vm729 = vcmp.eq.s32.totalorder %v264, %v571
        %vm730 = vcmp.eq.s32.totalorder %v264, %v574
        %vm731 = vcmp.eq.s32.totalorder %v264, %v577
        %vm732 = vcmp.eq.s32.totalorder %v264, %v580
        %vm733 = vcmp.eq.s32.totalorder %v264, %v583
        %vm734 = vcmp.eq.s32.totalorder %v264, %v586
        %vm735 = vcmp.eq.s32.totalorder %v264, %v589
        %vm736 = vcmp.eq.s32.totalorder %v264, %v592
        %vm737 = vcmp.eq.s32.totalorder %v264, %v595
        %vm738 = vcmp.eq.s32.totalorder %v264, %v598
        %vm739 = vcmp.eq.s32.totalorder %v264, %v601
        %vm740 = vcmp.eq.s32.totalorder %v264, %v604
        %vm741 = vcmp.eq.s32.totalorder %v264, %v607
        %vm742 = vcmp.eq.s32.totalorder %v264, %v610
        %vm743 = vcmp.eq.s32.totalorder %v264, %v613
        %vm744 = vcmp.eq.s32.totalorder %v264, %v616
        %vm745 = vcmp.eq.s32.totalorder %v264, %v619
        %vm746 = vcmp.eq.s32.totalorder %v264, %v622
        %vm747 = vcmp.eq.s32.totalorder %v264, %v625
        %vm748 = vcmp.eq.s32.totalorder %v264, %v628
        %vm749 = vcmp.eq.s32.totalorder %v264, %v631
        %vm750 = vcmp.eq.s32.totalorder %v264, %v634
        %vm751 = vcmp.eq.s32.totalorder %v264, %v637
        %vm752 = vcmp.eq.s32.totalorder %v264, %v640
        %vm753 = vcmp.eq.s32.totalorder %v264, %v643
        %vm754 = vcmp.eq.s32.totalorder %v264, %v646
        %vm755 = vcmp.eq.s32.totalorder %v264, %v649
        %vm756 = vcmp.eq.s32.totalorder %v264, %v652
        %vm757 = vcmp.eq.s32.totalorder %v264, %v655
        %vm758 = vcmp.eq.s32.totalorder %v264, %v658
        %vm759 = vcmp.eq.s32.totalorder %v264, %v661
        %vm760 = vcmp.eq.s32.totalorder %v264, %v664
        %vm761 = vcmp.eq.s32.totalorder %v264, %v667
        %vm762 = vcmp.eq.s32.totalorder %v264, %v670
        %vm763 = vcmp.eq.s32.totalorder %v264, %v673
        %vm764 = vcmp.eq.s32.totalorder %v264, %v676
        %vm765 = vcmp.eq.s32.totalorder %v264, %v679
        %vm766 = vcmp.eq.s32.totalorder %v264, %v682
        %vm767 = vcmp.eq.s32.totalorder %v264, %v685
        %vm768 = vcmp.eq.s32.totalorder %v264, %v688
        %vm769 = vcmp.eq.s32.totalorder %v264, %v691
        %vm770 = vcmp.eq.s32.totalorder %v264, %v694
        %vm771 = vcmp.eq.s32.totalorder %v264, %v697
        %vm772 = vcmp.eq.s32.totalorder %v264, %v700
        %vm773 = vcmp.eq.s32.totalorder %v264, %v703
        %vm774 = vcmp.eq.s32.totalorder %v264, %v706
        %vm775 = vcmp.eq.s32.totalorder %v264, %v709
        %vm776 = vcmp.eq.s32.totalorder %v264, %v712
        %vm777 = vmor %vm457, %vm713
        %vm778 = vmor %vm458, %vm714
        %vm779 = vmor %vm459, %vm715
        %vm780 = vmor %vm460, %vm716
        %vm781 = vmor %vm461, %vm717
        %vm782 = vmor %vm462, %vm718
        %vm783 = vmor %vm463, %vm719
        %vm784 = vmor %vm464, %vm720
        %vm785 = vmor %vm465, %vm721
        %vm786 = vmor %vm466, %vm722
        %vm787 = vmor %vm467, %vm723
        %vm788 = vmor %vm468, %vm724
        %vm789 = vmor %vm469, %vm725
        %vm790 = vmor %vm470, %vm726
        %vm791 = vmor %vm471, %vm727
        %vm792 = vmor %vm472, %vm728
        %vm793 = vmor %vm473, %vm729
        %vm794 = vmor %vm474, %vm730
        %vm795 = vmor %vm475, %vm731
        %vm796 = vmor %vm476, %vm732
        %vm797 = vmor %vm477, %vm733
        %vm798 = vmor %vm478, %vm734
        %vm799 = vmor %vm479, %vm735
        %vm800 = vmor %vm480, %vm736
        %vm801 = vmor %vm481, %vm737
        %vm802 = vmor %vm482, %vm738
        %vm803 = vmor %vm483, %vm739
        %vm804 = vmor %vm484, %vm740
        %vm805 = vmor %vm485, %vm741
        %vm806 = vmor %vm486, %vm742
        %vm807 = vmor %vm487, %vm743
        %vm808 = vmor %vm488, %vm744
        %vm809 = vmor %vm489, %vm745
        %vm810 = vmor %vm490, %vm746
        %vm811 = vmor %vm491, %vm747
        %vm812 = vmor %vm492, %vm748
        %vm813 = vmor %vm493, %vm749
        %vm814 = vmor %vm494, %vm750
        %vm815 = vmor %vm495, %vm751
        %vm816 = vmor %vm496, %vm752
        %vm817 = vmor %vm497, %vm753
        %vm818 = vmor %vm498, %vm754
        %vm819 = vmor %vm499, %vm755
        %vm820 = vmor %vm500, %vm756
        %vm821 = vmor %vm501, %vm757
        %vm822 = vmor %vm502, %vm758
        %vm823 = vmor %vm503, %vm759
        %vm824 = vmor %vm504, %vm760
        %vm825 = vmor %vm505, %vm761
        %vm826 = vmor %vm506, %vm762
        %vm827 = vmor %vm507, %vm763
        %vm828 = vmor %vm508, %vm764
        %vm829 = vmor %vm509, %vm765
        %vm830 = vmor %vm510, %vm766
        %vm831 = vmor %vm511, %vm767
        %vm832 = vmor %vm512, %vm768
        %vm833 = vmor %vm513, %vm769
        %vm834 = vmor %vm514, %vm770
        %vm835 = vmor %vm515, %vm771
        %vm836 = vmor %vm516, %vm772
        %vm837 = vmor %vm517, %vm773
        %vm838 = vmor %vm518, %vm774
        %vm839 = vmor %vm519, %vm775
        %vm840 = vmor %vm520, %vm776
        %841 = vset.pattern.permute.xlu0 2
        %842 = vperm.xlu0 %841, %v199
        %v843 = vpop.permute.xlu0 %842
        %844 = vset.pattern.permute.xlu0 2
        %845 = vperm.xlu0 %844, %v200
        %v846 = vpop.permute.xlu0 %845
        %847 = vset.pattern.permute.xlu0 2
        %848 = vperm.xlu0 %847, %v201
        %v849 = vpop.permute.xlu0 %848
        %850 = vset.pattern.permute.xlu0 2
        %851 = vperm.xlu0 %850, %v202
        %v852 = vpop.permute.xlu0 %851
        %853 = vset.pattern.permute.xlu0 2
        %854 = vperm.xlu0 %853, %v203
        %v855 = vpop.permute.xlu0 %854
        %856 = vset.pattern.permute.xlu0 2
        %857 = vperm.xlu0 %856, %v204
        %v858 = vpop.permute.xlu0 %857
        %859 = vset.pattern.permute.xlu0 2
        %860 = vperm.xlu0 %859, %v205
        %v861 = vpop.permute.xlu0 %860
        %862 = vset.pattern.permute.xlu0 2
        %863 = vperm.xlu0 %862, %v206
        %v864 = vpop.permute.xlu0 %863
        %865 = vset.pattern.permute.xlu0 2
        %866 = vperm.xlu0 %865, %v207
        %v867 = vpop.permute.xlu0 %866
        %868 = vset.pattern.permute.xlu0 2
        %869 = vperm.xlu0 %868, %v208
        %v870 = vpop.permute.xlu0 %869
        %871 = vset.pattern.permute.xlu0 2
        %872 = vperm.xlu0 %871, %v209
        %v873 = vpop.permute.xlu0 %872
        %874 = vset.pattern.permute.xlu0 2
        %875 = vperm.xlu0 %874, %v210
        %v876 = vpop.permute.xlu0 %875
        %877 = vset.pattern.permute.xlu0 2
        %878 = vperm.xlu0 %877, %v211
        %v879 = vpop.permute.xlu0 %878
        %880 = vset.pattern.permute.xlu0 2
        %881 = vperm.xlu0 %880, %v212
        %v882 = vpop.permute.xlu0 %881
        %883 = vset.pattern.permute.xlu0 2
        %884 = vperm.xlu0 %883, %v213
        %v885 = vpop.permute.xlu0 %884
        %886 = vset.pattern.permute.xlu0 2
        %887 = vperm.xlu0 %886, %v214
        %v888 = vpop.permute.xlu0 %887
        %889 = vset.pattern.permute.xlu0 2
        %890 = vperm.xlu0 %889, %v215
        %v891 = vpop.permute.xlu0 %890
        %892 = vset.pattern.permute.xlu0 2
        %893 = vperm.xlu0 %892, %v216
        %v894 = vpop.permute.xlu0 %893
        %895 = vset.pattern.permute.xlu0 2
        %896 = vperm.xlu0 %895, %v217
        %v897 = vpop.permute.xlu0 %896
        %898 = vset.pattern.permute.xlu0 2
        %899 = vperm.xlu0 %898, %v218
        %v900 = vpop.permute.xlu0 %899
        %901 = vset.pattern.permute.xlu0 2
        %902 = vperm.xlu0 %901, %v219
        %v903 = vpop.permute.xlu0 %902
        %904 = vset.pattern.permute.xlu0 2
        %905 = vperm.xlu0 %904, %v220
        %v906 = vpop.permute.xlu0 %905
        %907 = vset.pattern.permute.xlu0 2
        %908 = vperm.xlu0 %907, %v221
        %v909 = vpop.permute.xlu0 %908
        %910 = vset.pattern.permute.xlu0 2
        %911 = vperm.xlu0 %910, %v222
        %v912 = vpop.permute.xlu0 %911
        %913 = vset.pattern.permute.xlu0 2
        %914 = vperm.xlu0 %913, %v223
        %v915 = vpop.permute.xlu0 %914
        %916 = vset.pattern.permute.xlu0 2
        %917 = vperm.xlu0 %916, %v224
        %v918 = vpop.permute.xlu0 %917
        %919 = vset.pattern.permute.xlu0 2
        %920 = vperm.xlu0 %919, %v225
        %v921 = vpop.permute.xlu0 %920
        %922 = vset.pattern.permute.xlu0 2
        %923 = vperm.xlu0 %922, %v226
        %v924 = vpop.permute.xlu0 %923
        %925 = vset.pattern.permute.xlu0 2
        %926 = vperm.xlu0 %925, %v227
        %v927 = vpop.permute.xlu0 %926
        %928 = vset.pattern.permute.xlu0 2
        %929 = vperm.xlu0 %928, %v228
        %v930 = vpop.permute.xlu0 %929
        %931 = vset.pattern.permute.xlu0 2
        %932 = vperm.xlu0 %931, %v229
        %v933 = vpop.permute.xlu0 %932
        %934 = vset.pattern.permute.xlu0 2
        %935 = vperm.xlu0 %934, %v230
        %v936 = vpop.permute.xlu0 %935
        %937 = vset.pattern.permute.xlu0 2
        %938 = vperm.xlu0 %937, %v231
        %v939 = vpop.permute.xlu0 %938
        %940 = vset.pattern.permute.xlu0 2
        %941 = vperm.xlu0 %940, %v232
        %v942 = vpop.permute.xlu0 %941
        %943 = vset.pattern.permute.xlu0 2
        %944 = vperm.xlu0 %943, %v233
        %v945 = vpop.permute.xlu0 %944
        %946 = vset.pattern.permute.xlu0 2
        %947 = vperm.xlu0 %946, %v234
        %v948 = vpop.permute.xlu0 %947
        %949 = vset.pattern.permute.xlu0 2
        %950 = vperm.xlu0 %949, %v235
        %v951 = vpop.permute.xlu0 %950
        %952 = vset.pattern.permute.xlu0 2
        %953 = vperm.xlu0 %952, %v236
        %v954 = vpop.permute.xlu0 %953
        %955 = vset.pattern.permute.xlu0 2
        %956 = vperm.xlu0 %955, %v237
        %v957 = vpop.permute.xlu0 %956
        %958 = vset.pattern.permute.xlu0 2
        %959 = vperm.xlu0 %958, %v238
        %v960 = vpop.permute.xlu0 %959
        %961 = vset.pattern.permute.xlu0 2
        %962 = vperm.xlu0 %961, %v239
        %v963 = vpop.permute.xlu0 %962
        %964 = vset.pattern.permute.xlu0 2
        %965 = vperm.xlu0 %964, %v240
        %v966 = vpop.permute.xlu0 %965
        %967 = vset.pattern.permute.xlu0 2
        %968 = vperm.xlu0 %967, %v241
        %v969 = vpop.permute.xlu0 %968
        %970 = vset.pattern.permute.xlu0 2
        %971 = vperm.xlu0 %970, %v242
        %v972 = vpop.permute.xlu0 %971
        %973 = vset.pattern.permute.xlu0 2
        %974 = vperm.xlu0 %973, %v243
        %v975 = vpop.permute.xlu0 %974
        %976 = vset.pattern.permute.xlu0 2
        %977 = vperm.xlu0 %976, %v244
        %v978 = vpop.permute.xlu0 %977
        %979 = vset.pattern.permute.xlu0 2
        %980 = vperm.xlu0 %979, %v245
        %v981 = vpop.permute.xlu0 %980
        %982 = vset.pattern.permute.xlu0 2
        %983 = vperm.xlu0 %982, %v246
        %v984 = vpop.permute.xlu0 %983
        %985 = vset.pattern.permute.xlu0 2
        %986 = vperm.xlu0 %985, %v247
        %v987 = vpop.permute.xlu0 %986
        %988 = vset.pattern.permute.xlu0 2
        %989 = vperm.xlu0 %988, %v248
        %v990 = vpop.permute.xlu0 %989
        %991 = vset.pattern.permute.xlu0 2
        %992 = vperm.xlu0 %991, %v249
        %v993 = vpop.permute.xlu0 %992
        %994 = vset.pattern.permute.xlu0 2
        %995 = vperm.xlu0 %994, %v250
        %v996 = vpop.permute.xlu0 %995
        %997 = vset.pattern.permute.xlu0 2
        %998 = vperm.xlu0 %997, %v251
        %v999 = vpop.permute.xlu0 %998
        %1000 = vset.pattern.permute.xlu0 2
        %1001 = vperm.xlu0 %1000, %v252
        %v1002 = vpop.permute.xlu0 %1001
        %1003 = vset.pattern.permute.xlu0 2
        %1004 = vperm.xlu0 %1003, %v253
        %v1005 = vpop.permute.xlu0 %1004
        %1006 = vset.pattern.permute.xlu0 2
        %1007 = vperm.xlu0 %1006, %v254
        %v1008 = vpop.permute.xlu0 %1007
        %1009 = vset.pattern.permute.xlu0 2
        %1010 = vperm.xlu0 %1009, %v255
        %v1011 = vpop.permute.xlu0 %1010
        %1012 = vset.pattern.permute.xlu0 2
        %1013 = vperm.xlu0 %1012, %v256
        %v1014 = vpop.permute.xlu0 %1013
        %1015 = vset.pattern.permute.xlu0 2
        %1016 = vperm.xlu0 %1015, %v257
        %v1017 = vpop.permute.xlu0 %1016
        %1018 = vset.pattern.permute.xlu0 2
        %1019 = vperm.xlu0 %1018, %v258
        %v1020 = vpop.permute.xlu0 %1019
        %1021 = vset.pattern.permute.xlu0 2
        %1022 = vperm.xlu0 %1021, %v259
        %v1023 = vpop.permute.xlu0 %1022
        %1024 = vset.pattern.permute.xlu0 2
        %1025 = vperm.xlu0 %1024, %v260
        %v1026 = vpop.permute.xlu0 %1025
        %1027 = vset.pattern.permute.xlu0 2
        %1028 = vperm.xlu0 %1027, %v261
        %v1029 = vpop.permute.xlu0 %1028
        %1030 = vset.pattern.permute.xlu0 2
        %1031 = vperm.xlu0 %1030, %v262
        %v1032 = vpop.permute.xlu0 %1031
        %vm1033 = vcmp.eq.s32.totalorder %v264, %v843
        %vm1034 = vcmp.eq.s32.totalorder %v264, %v846
        %vm1035 = vcmp.eq.s32.totalorder %v264, %v849
        %vm1036 = vcmp.eq.s32.totalorder %v264, %v852
        %vm1037 = vcmp.eq.s32.totalorder %v264, %v855
        %vm1038 = vcmp.eq.s32.totalorder %v264, %v858
        %vm1039 = vcmp.eq.s32.totalorder %v264, %v861
        %vm1040 = vcmp.eq.s32.totalorder %v264, %v864
        %vm1041 = vcmp.eq.s32.totalorder %v264, %v867
        %vm1042 = vcmp.eq.s32.totalorder %v264, %v870
        %vm1043 = vcmp.eq.s32.totalorder %v264, %v873
        %vm1044 = vcmp.eq.s32.totalorder %v264, %v876
        %vm1045 = vcmp.eq.s32.totalorder %v264, %v879
        %vm1046 = vcmp.eq.s32.totalorder %v264, %v882
        %vm1047 = vcmp.eq.s32.totalorder %v264, %v885
        %vm1048 = vcmp.eq.s32.totalorder %v264, %v888
        %vm1049 = vcmp.eq.s32.totalorder %v264, %v891
        %vm1050 = vcmp.eq.s32.totalorder %v264, %v894
        %vm1051 = vcmp.eq.s32.totalorder %v264, %v897
        %vm1052 = vcmp.eq.s32.totalorder %v264, %v900
        %vm1053 = vcmp.eq.s32.totalorder %v264, %v903
        %vm1054 = vcmp.eq.s32.totalorder %v264, %v906
        %vm1055 = vcmp.eq.s32.totalorder %v264, %v909
        %vm1056 = vcmp.eq.s32.totalorder %v264, %v912
        %vm1057 = vcmp.eq.s32.totalorder %v264, %v915
        %vm1058 = vcmp.eq.s32.totalorder %v264, %v918
        %vm1059 = vcmp.eq.s32.totalorder %v264, %v921
        %vm1060 = vcmp.eq.s32.totalorder %v264, %v924
        %vm1061 = vcmp.eq.s32.totalorder %v264, %v927
        %vm1062 = vcmp.eq.s32.totalorder %v264, %v930
        %vm1063 = vcmp.eq.s32.totalorder %v264, %v933
        %vm1064 = vcmp.eq.s32.totalorder %v264, %v936
        %vm1065 = vcmp.eq.s32.totalorder %v264, %v939
        %vm1066 = vcmp.eq.s32.totalorder %v264, %v942
        %vm1067 = vcmp.eq.s32.totalorder %v264, %v945
        %vm1068 = vcmp.eq.s32.totalorder %v264, %v948
        %vm1069 = vcmp.eq.s32.totalorder %v264, %v951
        %vm1070 = vcmp.eq.s32.totalorder %v264, %v954
        %vm1071 = vcmp.eq.s32.totalorder %v264, %v957
        %vm1072 = vcmp.eq.s32.totalorder %v264, %v960
        %vm1073 = vcmp.eq.s32.totalorder %v264, %v963
        %vm1074 = vcmp.eq.s32.totalorder %v264, %v966
        %vm1075 = vcmp.eq.s32.totalorder %v264, %v969
        %vm1076 = vcmp.eq.s32.totalorder %v264, %v972
        %vm1077 = vcmp.eq.s32.totalorder %v264, %v975
        %vm1078 = vcmp.eq.s32.totalorder %v264, %v978
        %vm1079 = vcmp.eq.s32.totalorder %v264, %v981
        %vm1080 = vcmp.eq.s32.totalorder %v264, %v984
        %vm1081 = vcmp.eq.s32.totalorder %v264, %v987
        %vm1082 = vcmp.eq.s32.totalorder %v264, %v990
        %vm1083 = vcmp.eq.s32.totalorder %v264, %v993
        %vm1084 = vcmp.eq.s32.totalorder %v264, %v996
        %vm1085 = vcmp.eq.s32.totalorder %v264, %v999
        %vm1086 = vcmp.eq.s32.totalorder %v264, %v1002
        %vm1087 = vcmp.eq.s32.totalorder %v264, %v1005
        %vm1088 = vcmp.eq.s32.totalorder %v264, %v1008
        %vm1089 = vcmp.eq.s32.totalorder %v264, %v1011
        %vm1090 = vcmp.eq.s32.totalorder %v264, %v1014
        %vm1091 = vcmp.eq.s32.totalorder %v264, %v1017
        %vm1092 = vcmp.eq.s32.totalorder %v264, %v1020
        %vm1093 = vcmp.eq.s32.totalorder %v264, %v1023
        %vm1094 = vcmp.eq.s32.totalorder %v264, %v1026
        %vm1095 = vcmp.eq.s32.totalorder %v264, %v1029
        %vm1096 = vcmp.eq.s32.totalorder %v264, %v1032
        %vm1097 = vmor %vm777, %vm1033
        %vm1098 = vmor %vm778, %vm1034
        %vm1099 = vmor %vm779, %vm1035
        %vm1100 = vmor %vm780, %vm1036
        %vm1101 = vmor %vm781, %vm1037
        %vm1102 = vmor %vm782, %vm1038
        %vm1103 = vmor %vm783, %vm1039
        %vm1104 = vmor %vm784, %vm1040
        %vm1105 = vmor %vm785, %vm1041
        %vm1106 = vmor %vm786, %vm1042
        %vm1107 = vmor %vm787, %vm1043
        %vm1108 = vmor %vm788, %vm1044
        %vm1109 = vmor %vm789, %vm1045
        %vm1110 = vmor %vm790, %vm1046
        %vm1111 = vmor %vm791, %vm1047
        %vm1112 = vmor %vm792, %vm1048
        %vm1113 = vmor %vm793, %vm1049
        %vm1114 = vmor %vm794, %vm1050
        %vm1115 = vmor %vm795, %vm1051
        %vm1116 = vmor %vm796, %vm1052
        %vm1117 = vmor %vm797, %vm1053
        %vm1118 = vmor %vm798, %vm1054
        %vm1119 = vmor %vm799, %vm1055
        %vm1120 = vmor %vm800, %vm1056
        %vm1121 = vmor %vm801, %vm1057
        %vm1122 = vmor %vm802, %vm1058
        %vm1123 = vmor %vm803, %vm1059
        %vm1124 = vmor %vm804, %vm1060
        %vm1125 = vmor %vm805, %vm1061
        %vm1126 = vmor %vm806, %vm1062
        %vm1127 = vmor %vm807, %vm1063
        %vm1128 = vmor %vm808, %vm1064
        %vm1129 = vmor %vm809, %vm1065
        %vm1130 = vmor %vm810, %vm1066
        %vm1131 = vmor %vm811, %vm1067
        %vm1132 = vmor %vm812, %vm1068
        %vm1133 = vmor %vm813, %vm1069
        %vm1134 = vmor %vm814, %vm1070
        %vm1135 = vmor %vm815, %vm1071
        %vm1136 = vmor %vm816, %vm1072
        %vm1137 = vmor %vm817, %vm1073
        %vm1138 = vmor %vm818, %vm1074
        %vm1139 = vmor %vm819, %vm1075
        %vm1140 = vmor %vm820, %vm1076
        %vm1141 = vmor %vm821, %vm1077
        %vm1142 = vmor %vm822, %vm1078
        %vm1143 = vmor %vm823, %vm1079
        %vm1144 = vmor %vm824, %vm1080
        %vm1145 = vmor %vm825, %vm1081
        %vm1146 = vmor %vm826, %vm1082
        %vm1147 = vmor %vm827, %vm1083
        %vm1148 = vmor %vm828, %vm1084
        %vm1149 = vmor %vm829, %vm1085
        %vm1150 = vmor %vm830, %vm1086
        %vm1151 = vmor %vm831, %vm1087
        %vm1152 = vmor %vm832, %vm1088
        %vm1153 = vmor %vm833, %vm1089
        %vm1154 = vmor %vm834, %vm1090
        %vm1155 = vmor %vm835, %vm1091
        %vm1156 = vmor %vm836, %vm1092
        %vm1157 = vmor %vm837, %vm1093
        %vm1158 = vmor %vm838, %vm1094
        %vm1159 = vmor %vm839, %vm1095
        %vm1160 = vmor %vm840, %vm1096
        %v1161 = vsel %vm1097, 1, 0
        %v1162 = vsel %vm1098, 1, 0
        %v1163 = vsel %vm1099, 1, 0
        %v1164 = vsel %vm1100, 1, 0
        %v1165 = vsel %vm1101, 1, 0
        %v1166 = vsel %vm1102, 1, 0
        %v1167 = vsel %vm1103, 1, 0
        %v1168 = vsel %vm1104, 1, 0
        %v1169 = vsel %vm1105, 1, 0
        %v1170 = vsel %vm1106, 1, 0
        %v1171 = vsel %vm1107, 1, 0
        %v1172 = vsel %vm1108, 1, 0
        %v1173 = vsel %vm1109, 1, 0
        %v1174 = vsel %vm1110, 1, 0
        %v1175 = vsel %vm1111, 1, 0
        %v1176 = vsel %vm1112, 1, 0
        %v1177 = vsel %vm1113, 1, 0
        %v1178 = vsel %vm1114, 1, 0
        %v1179 = vsel %vm1115, 1, 0
        %v1180 = vsel %vm1116, 1, 0
        %v1181 = vsel %vm1117, 1, 0
        %v1182 = vsel %vm1118, 1, 0
        %v1183 = vsel %vm1119, 1, 0
        %v1184 = vsel %vm1120, 1, 0
        %v1185 = vsel %vm1121, 1, 0
        %v1186 = vsel %vm1122, 1, 0
        %v1187 = vsel %vm1123, 1, 0
        %v1188 = vsel %vm1124, 1, 0
        %v1189 = vsel %vm1125, 1, 0
        %v1190 = vsel %vm1126, 1, 0
        %v1191 = vsel %vm1127, 1, 0
        %v1192 = vsel %vm1128, 1, 0
        %v1193 = vsel %vm1129, 1, 0
        %v1194 = vsel %vm1130, 1, 0
        %v1195 = vsel %vm1131, 1, 0
        %v1196 = vsel %vm1132, 1, 0
        %v1197 = vsel %vm1133, 1, 0
        %v1198 = vsel %vm1134, 1, 0
        %v1199 = vsel %vm1135, 1, 0
        %v1200 = vsel %vm1136, 1, 0
        %v1201 = vsel %vm1137, 1, 0
        %v1202 = vsel %vm1138, 1, 0
        %v1203 = vsel %vm1139, 1, 0
        %v1204 = vsel %vm1140, 1, 0
        %v1205 = vsel %vm1141, 1, 0
        %v1206 = vsel %vm1142, 1, 0
        %v1207 = vsel %vm1143, 1, 0
        %v1208 = vsel %vm1144, 1, 0
        %v1209 = vsel %vm1145, 1, 0
        %v1210 = vsel %vm1146, 1, 0
        %v1211 = vsel %vm1147, 1, 0
        %v1212 = vsel %vm1148, 1, 0
        %v1213 = vsel %vm1149, 1, 0
        %v1214 = vsel %vm1150, 1, 0
        %v1215 = vsel %vm1151, 1, 0
        %v1216 = vsel %vm1152, 1, 0
        %v1217 = vsel %vm1153, 1, 0
        %v1218 = vsel %vm1154, 1, 0
        %v1219 = vsel %vm1155, 1, 0
        %v1220 = vsel %vm1156, 1, 0
        %v1221 = vsel %vm1157, 1, 0
        %v1222 = vsel %vm1158, 1, 0
        %v1223 = vsel %vm1159, 1, 0
        %v1224 = vsel %vm1160, 1, 0
        %v1225 = vcvt.s32.f32 %v1161
        %v1226 = vcvt.s32.f32 %v1162
        %v1227 = vcvt.s32.f32 %v1163
        %v1228 = vcvt.s32.f32 %v1164
        %v1229 = vcvt.s32.f32 %v1165
        %v1230 = vcvt.s32.f32 %v1166
        %v1231 = vcvt.s32.f32 %v1167
        %v1232 = vcvt.s32.f32 %v1168
        %v1233 = vcvt.s32.f32 %v1169
        %v1234 = vcvt.s32.f32 %v1170
        %v1235 = vcvt.s32.f32 %v1171
        %v1236 = vcvt.s32.f32 %v1172
        %v1237 = vcvt.s32.f32 %v1173
        %v1238 = vcvt.s32.f32 %v1174
        %v1239 = vcvt.s32.f32 %v1175
        %v1240 = vcvt.s32.f32 %v1176
        %v1241 = vcvt.s32.f32 %v1177
        %v1242 = vcvt.s32.f32 %v1178
        %v1243 = vcvt.s32.f32 %v1179
        %v1244 = vcvt.s32.f32 %v1180
        %v1245 = vcvt.s32.f32 %v1181
        %v1246 = vcvt.s32.f32 %v1182
        %v1247 = vcvt.s32.f32 %v1183
        %v1248 = vcvt.s32.f32 %v1184
        %v1249 = vcvt.s32.f32 %v1185
        %v1250 = vcvt.s32.f32 %v1186
        %v1251 = vcvt.s32.f32 %v1187
        %v1252 = vcvt.s32.f32 %v1188
        %v1253 = vcvt.s32.f32 %v1189
        %v1254 = vcvt.s32.f32 %v1190
        %v1255 = vcvt.s32.f32 %v1191
        %v1256 = vcvt.s32.f32 %v1192
        %v1257 = vcvt.s32.f32 %v1193
        %v1258 = vcvt.s32.f32 %v1194
        %v1259 = vcvt.s32.f32 %v1195
        %v1260 = vcvt.s32.f32 %v1196
        %v1261 = vcvt.s32.f32 %v1197
        %v1262 = vcvt.s32.f32 %v1198
        %v1263 = vcvt.s32.f32 %v1199
        %v1264 = vcvt.s32.f32 %v1200
        %v1265 = vcvt.s32.f32 %v1201
        %v1266 = vcvt.s32.f32 %v1202
        %v1267 = vcvt.s32.f32 %v1203
        %v1268 = vcvt.s32.f32 %v1204
        %v1269 = vcvt.s32.f32 %v1205
        %v1270 = vcvt.s32.f32 %v1206
        %v1271 = vcvt.s32.f32 %v1207
        %v1272 = vcvt.s32.f32 %v1208
        %v1273 = vcvt.s32.f32 %v1209
        %v1274 = vcvt.s32.f32 %v1210
        %v1275 = vcvt.s32.f32 %v1211
        %v1276 = vcvt.s32.f32 %v1212
        %v1277 = vcvt.s32.f32 %v1213
        %v1278 = vcvt.s32.f32 %v1214
        %v1279 = vcvt.s32.f32 %v1215
        %v1280 = vcvt.s32.f32 %v1216
        %v1281 = vcvt.s32.f32 %v1217
        %v1282 = vcvt.s32.f32 %v1218
        %v1283 = vcvt.s32.f32 %v1219
        %v1284 = vcvt.s32.f32 %v1220
        %v1285 = vcvt.s32.f32 %v1221
        %v1286 = vcvt.s32.f32 %v1222
        %v1287 = vcvt.s32.f32 %v1223
        %v1288 = vcvt.s32.f32 %v1224
        %v1289 = vpack.c.bf16 %v1226, %v1225
        %v1290 = vpack.c.bf16 %v1228, %v1227
        %v1291 = vpack.c.bf16 %v1230, %v1229
        %v1292 = vpack.c.bf16 %v1232, %v1231
        %v1293 = vpack.c.bf16 %v1234, %v1233
        %v1294 = vpack.c.bf16 %v1236, %v1235
        %v1295 = vpack.c.bf16 %v1238, %v1237
        %v1296 = vpack.c.bf16 %v1240, %v1239
        %v1297 = vpack.c.bf16 %v1242, %v1241
        %v1298 = vpack.c.bf16 %v1244, %v1243
        %v1299 = vpack.c.bf16 %v1246, %v1245
        %v1300 = vpack.c.bf16 %v1248, %v1247
        %v1301 = vpack.c.bf16 %v1250, %v1249
        %v1302 = vpack.c.bf16 %v1252, %v1251
        %v1303 = vpack.c.bf16 %v1254, %v1253
        %v1304 = vpack.c.bf16 %v1256, %v1255
        %v1305 = vpack.c.bf16 %v1258, %v1257
        %v1306 = vpack.c.bf16 %v1260, %v1259
        %v1307 = vpack.c.bf16 %v1262, %v1261
        %v1308 = vpack.c.bf16 %v1264, %v1263
        %v1309 = vpack.c.bf16 %v1266, %v1265
        %v1310 = vpack.c.bf16 %v1268, %v1267
        %v1311 = vpack.c.bf16 %v1270, %v1269
        %v1312 = vpack.c.bf16 %v1272, %v1271
        %v1313 = vpack.c.bf16 %v1274, %v1273
        %v1314 = vpack.c.bf16 %v1276, %v1275
        %v1315 = vpack.c.bf16 %v1278, %v1277
        %v1316 = vpack.c.bf16 %v1280, %v1279
        %v1317 = vpack.c.bf16 %v1282, %v1281
        %v1318 = vpack.c.bf16 %v1284, %v1283
        %v1319 = vpack.c.bf16 %v1286, %v1285
        %v1320 = vpack.c.bf16 %v1288, %v1287
        %v1321 = vld [vmem:[%s1] sm:$0xf]
        %v1322 = vld [vmem:[%s1 + $0x4] sm:$0xf]
        %v1323 = vld [vmem:[%s1 + $0x8] sm:$0xf]
        %v1324 = vld [vmem:[%s1 + $0xc] sm:$0xf]
        %v1325 = vld [vmem:[%s1 + $0x10] sm:$0xf]
        %v1326 = vld [vmem:[%s1 + $0x14] sm:$0xf]
        %v1327 = vld [vmem:[%s1 + $0x18] sm:$0xf]
        %v1328 = vld [vmem:[%s1 + $0x1c] sm:$0xf]
        %v1329 = vld [vmem:[%s1 + $0x20] sm:$0xf]
        %v1330 = vld [vmem:[%s1 + $0x24] sm:$0xf]
        %v1331 = vld [vmem:[%s1 + $0x28] sm:$0xf]
        %v1332 = vld [vmem:[%s1 + $0x2c] sm:$0xf]
        %v1333 = vld [vmem:[%s1 + $0x30] sm:$0xf]
        %v1334 = vld [vmem:[%s1 + $0x34] sm:$0xf]
        %v1335 = vld [vmem:[%s1 + $0x38] sm:$0xf]
        %v1336 = vld [vmem:[%s1 + $0x3c] sm:$0xf]
        %v1353 = vunpack.c.l.b16 %v1321
        %v1354 = vunpack.c.l.b16 %v1322
        %v1355 = vunpack.c.l.b16 %v1323
        %v1356 = vunpack.c.l.b16 %v1324
        %v1357 = vunpack.c.l.b16 %v1325
        %v1358 = vunpack.c.l.b16 %v1326
        %v1359 = vunpack.c.l.b16 %v1327
        %v1360 = vunpack.c.l.b16 %v1328
        %v1361 = vunpack.c.l.b16 %v1329
        %v1362 = vunpack.c.l.b16 %v1330
        %v1363 = vunpack.c.l.b16 %v1331
        %v1364 = vunpack.c.l.b16 %v1332
        %v1365 = vunpack.c.l.b16 %v1333
        %v1366 = vunpack.c.l.b16 %v1334
        %v1367 = vunpack.c.l.b16 %v1335
        %v1368 = vunpack.c.l.b16 %v1336
        %v1369 = vpack.c.b16 %v1354, %v1353
        %v1370 = vpack.c.b16 %v1356, %v1355
        %v1371 = vpack.c.b16 %v1358, %v1357
        %v1372 = vpack.c.b16 %v1360, %v1359
        %v1373 = vpack.c.b16 %v1362, %v1361
        %v1374 = vpack.c.b16 %v1364, %v1363
        %v1375 = vpack.c.b16 %v1366, %v1365
        %v1376 = vpack.c.b16 %v1368, %v1367
        %1385 = vmatpush.bf16.msra.mxu0 %v1376
        %1386 = vmatpush.bf16.msra.mxu0 %v1375
        %1387 = vmatpush.bf16.msra.mxu0 %v1374
        %1388 = vmatpush.bf16.msra.mxu0 %v1373
        %1389 = vmatpush.bf16.msra.mxu0 %v1372
        %1390 = vmatpush.bf16.msra.mxu0 %v1371
        %1391 = vmatpush.bf16.msra.mxu0 %v1370
        %1392 = vmatpush.bf16.msra.mxu0 %v1369
        %1393 = vmatmul.bf16.gmra.mxu0 %v1289
        %v1394 = vpop.f32.mrf.mxu0
        %v1395 = vadd.f32 0.0, %v1394
        %v1396 = vpop.f32.mrf.mxu0
        %v1397 = vadd.f32 0.0, %v1396
        %1398 = vmatmul.bf16.gmra.mxu0 %v1290
        %v1399 = vpop.f32.mrf.mxu0
        %v1400 = vadd.f32 0.0, %v1399
        %v1401 = vpop.f32.mrf.mxu0
        %v1402 = vadd.f32 0.0, %v1401
        %1403 = vmatmul.bf16.gmra.mxu0 %v1291
        %v1404 = vpop.f32.mrf.mxu0
        %v1405 = vadd.f32 0.0, %v1404
        %v1406 = vpop.f32.mrf.mxu0
        %v1407 = vadd.f32 0.0, %v1406
        %1408 = vmatmul.bf16.gmra.mxu0 %v1292
        %v1409 = vpop.f32.mrf.mxu0
        %v1410 = vadd.f32 0.0, %v1409
        %v1411 = vpop.f32.mrf.mxu0
        %v1412 = vadd.f32 0.0, %v1411
        %1413 = vmatmul.bf16.gmra.mxu0 %v1293
        %v1414 = vpop.f32.mrf.mxu0
        %v1415 = vadd.f32 0.0, %v1414
        %v1416 = vpop.f32.mrf.mxu0
        %v1417 = vadd.f32 0.0, %v1416
        %1418 = vmatmul.bf16.gmra.mxu0 %v1294
        %v1419 = vpop.f32.mrf.mxu0
        %v1420 = vadd.f32 0.0, %v1419
        %v1421 = vpop.f32.mrf.mxu0
        %v1422 = vadd.f32 0.0, %v1421
        %1423 = vmatmul.bf16.gmra.mxu0 %v1295
        %v1424 = vpop.f32.mrf.mxu0
        %v1425 = vadd.f32 0.0, %v1424
        %v1426 = vpop.f32.mrf.mxu0
        %v1427 = vadd.f32 0.0, %v1426
        %1428 = vmatmul.bf16.gmra.mxu0 %v1296
        %v1429 = vpop.f32.mrf.mxu0
        %v1430 = vadd.f32 0.0, %v1429
        %v1431 = vpop.f32.mrf.mxu0
        %v1432 = vadd.f32 0.0, %v1431
        %1433 = vmatmul.bf16.gmra.mxu0 %v1297
        %v1434 = vpop.f32.mrf.mxu0
        %v1435 = vadd.f32 0.0, %v1434
        %v1436 = vpop.f32.mrf.mxu0
        %v1437 = vadd.f32 0.0, %v1436
        %1438 = vmatmul.bf16.gmra.mxu0 %v1298
        %v1439 = vpop.f32.mrf.mxu0
        %v1440 = vadd.f32 0.0, %v1439
        %v1441 = vpop.f32.mrf.mxu0
        %v1442 = vadd.f32 0.0, %v1441
        %1443 = vmatmul.bf16.gmra.mxu0 %v1299
        %v1444 = vpop.f32.mrf.mxu0
        %v1445 = vadd.f32 0.0, %v1444
        %v1446 = vpop.f32.mrf.mxu0
        %v1447 = vadd.f32 0.0, %v1446
        %1448 = vmatmul.bf16.gmra.mxu0 %v1300
        %v1449 = vpop.f32.mrf.mxu0
        %v1450 = vadd.f32 0.0, %v1449
        %v1451 = vpop.f32.mrf.mxu0
        %v1452 = vadd.f32 0.0, %v1451
        %1453 = vmatmul.bf16.gmra.mxu0 %v1301
        %v1454 = vpop.f32.mrf.mxu0
        %v1455 = vadd.f32 0.0, %v1454
        %v1456 = vpop.f32.mrf.mxu0
        %v1457 = vadd.f32 0.0, %v1456
        %1458 = vmatmul.bf16.gmra.mxu0 %v1302
        %v1459 = vpop.f32.mrf.mxu0
        %v1460 = vadd.f32 0.0, %v1459
        %v1461 = vpop.f32.mrf.mxu0
        %v1462 = vadd.f32 0.0, %v1461
        %1463 = vmatmul.bf16.gmra.mxu0 %v1303
        %v1464 = vpop.f32.mrf.mxu0
        %v1465 = vadd.f32 0.0, %v1464
        %v1466 = vpop.f32.mrf.mxu0
        %v1467 = vadd.f32 0.0, %v1466
        %1468 = vmatmul.bf16.gmra.mxu0 %v1304
        %v1469 = vpop.f32.mrf.mxu0
        %v1470 = vadd.f32 0.0, %v1469
        %v1471 = vpop.f32.mrf.mxu0
        %v1472 = vadd.f32 0.0, %v1471
        %1473 = vmatmul.bf16.gmra.mxu0 %v1305
        %v1474 = vpop.f32.mrf.mxu0
        %v1475 = vadd.f32 0.0, %v1474
        %v1476 = vpop.f32.mrf.mxu0
        %v1477 = vadd.f32 0.0, %v1476
        %1478 = vmatmul.bf16.gmra.mxu0 %v1306
        %v1479 = vpop.f32.mrf.mxu0
        %v1480 = vadd.f32 0.0, %v1479
        %v1481 = vpop.f32.mrf.mxu0
        %v1482 = vadd.f32 0.0, %v1481
        %1483 = vmatmul.bf16.gmra.mxu0 %v1307
        %v1484 = vpop.f32.mrf.mxu0
        %v1485 = vadd.f32 0.0, %v1484
        %v1486 = vpop.f32.mrf.mxu0
        %v1487 = vadd.f32 0.0, %v1486
        %1488 = vmatmul.bf16.gmra.mxu0 %v1308
        %v1489 = vpop.f32.mrf.mxu0
        %v1490 = vadd.f32 0.0, %v1489
        %v1491 = vpop.f32.mrf.mxu0
        %v1492 = vadd.f32 0.0, %v1491
        %1493 = vmatmul.bf16.gmra.mxu0 %v1309
        %v1494 = vpop.f32.mrf.mxu0
        %v1495 = vadd.f32 0.0, %v1494
        %v1496 = vpop.f32.mrf.mxu0
        %v1497 = vadd.f32 0.0, %v1496
        %1498 = vmatmul.bf16.gmra.mxu0 %v1310
        %v1499 = vpop.f32.mrf.mxu0
        %v1500 = vadd.f32 0.0, %v1499
        %v1501 = vpop.f32.mrf.mxu0
        %v1502 = vadd.f32 0.0, %v1501
        %1503 = vmatmul.bf16.gmra.mxu0 %v1311
        %v1504 = vpop.f32.mrf.mxu0
        %v1505 = vadd.f32 0.0, %v1504
        %v1506 = vpop.f32.mrf.mxu0
        %v1507 = vadd.f32 0.0, %v1506
        %1508 = vmatmul.bf16.gmra.mxu0 %v1312
        %v1509 = vpop.f32.mrf.mxu0
        %v1510 = vadd.f32 0.0, %v1509
        %v1511 = vpop.f32.mrf.mxu0
        %v1512 = vadd.f32 0.0, %v1511
        %1513 = vmatmul.bf16.gmra.mxu0 %v1313
        %v1514 = vpop.f32.mrf.mxu0
        %v1515 = vadd.f32 0.0, %v1514
        %v1516 = vpop.f32.mrf.mxu0
        %v1517 = vadd.f32 0.0, %v1516
        %1518 = vmatmul.bf16.gmra.mxu0 %v1314
        %v1519 = vpop.f32.mrf.mxu0
        %v1520 = vadd.f32 0.0, %v1519
        %v1521 = vpop.f32.mrf.mxu0
        %v1522 = vadd.f32 0.0, %v1521
        %1523 = vmatmul.bf16.gmra.mxu0 %v1315
        %v1524 = vpop.f32.mrf.mxu0
        %v1525 = vadd.f32 0.0, %v1524
        %v1526 = vpop.f32.mrf.mxu0
        %v1527 = vadd.f32 0.0, %v1526
        %1528 = vmatmul.bf16.gmra.mxu0 %v1316
        %v1529 = vpop.f32.mrf.mxu0
        %v1530 = vadd.f32 0.0, %v1529
        %v1531 = vpop.f32.mrf.mxu0
        %v1532 = vadd.f32 0.0, %v1531
        %1533 = vmatmul.bf16.gmra.mxu0 %v1317
        %v1534 = vpop.f32.mrf.mxu0
        %v1535 = vadd.f32 0.0, %v1534
        %v1536 = vpop.f32.mrf.mxu0
        %v1537 = vadd.f32 0.0, %v1536
        %1538 = vmatmul.bf16.gmra.mxu0 %v1318
        %v1539 = vpop.f32.mrf.mxu0
        %v1540 = vadd.f32 0.0, %v1539
        %v1541 = vpop.f32.mrf.mxu0
        %v1542 = vadd.f32 0.0, %v1541
        %1543 = vmatmul.bf16.gmra.mxu0 %v1319
        %v1544 = vpop.f32.mrf.mxu0
        %v1545 = vadd.f32 0.0, %v1544
        %v1546 = vpop.f32.mrf.mxu0
        %v1547 = vadd.f32 0.0, %v1546
        %1548 = vmatmul.bf16.gmra.mxu0 %v1320
        %v1549 = vpop.f32.mrf.mxu0
        %v1550 = vadd.f32 0.0, %v1549
        %v1551 = vpop.f32.mrf.mxu0
        %v1552 = vadd.f32 0.0, %v1551
        %1553 = vdwg.mxu0
        %vm1554 = vcmp.gt.f32.partialorder %v1395, 0.0
        %vm1555 = vcmp.gt.f32.partialorder %v1397, 0.0
        %vm1556 = vcmp.gt.f32.partialorder %v1400, 0.0
        %vm1557 = vcmp.gt.f32.partialorder %v1402, 0.0
        %vm1558 = vcmp.gt.f32.partialorder %v1405, 0.0
        %vm1559 = vcmp.gt.f32.partialorder %v1407, 0.0
        %vm1560 = vcmp.gt.f32.partialorder %v1410, 0.0
        %vm1561 = vcmp.gt.f32.partialorder %v1412, 0.0
        %vm1562 = vcmp.gt.f32.partialorder %v1415, 0.0
        %vm1563 = vcmp.gt.f32.partialorder %v1417, 0.0
        %vm1564 = vcmp.gt.f32.partialorder %v1420, 0.0
        %vm1565 = vcmp.gt.f32.partialorder %v1422, 0.0
        %vm1566 = vcmp.gt.f32.partialorder %v1425, 0.0
        %vm1567 = vcmp.gt.f32.partialorder %v1427, 0.0
        %vm1568 = vcmp.gt.f32.partialorder %v1430, 0.0
        %vm1569 = vcmp.gt.f32.partialorder %v1432, 0.0
        %vm1570 = vcmp.gt.f32.partialorder %v1435, 0.0
        %vm1571 = vcmp.gt.f32.partialorder %v1437, 0.0
        %vm1572 = vcmp.gt.f32.partialorder %v1440, 0.0
        %vm1573 = vcmp.gt.f32.partialorder %v1442, 0.0
        %vm1574 = vcmp.gt.f32.partialorder %v1445, 0.0
        %vm1575 = vcmp.gt.f32.partialorder %v1447, 0.0
        %vm1576 = vcmp.gt.f32.partialorder %v1450, 0.0
        %vm1577 = vcmp.gt.f32.partialorder %v1452, 0.0
        %vm1578 = vcmp.gt.f32.partialorder %v1455, 0.0
        %vm1579 = vcmp.gt.f32.partialorder %v1457, 0.0
        %vm1580 = vcmp.gt.f32.partialorder %v1460, 0.0
        %vm1581 = vcmp.gt.f32.partialorder %v1462, 0.0
        %vm1582 = vcmp.gt.f32.partialorder %v1465, 0.0
        %vm1583 = vcmp.gt.f32.partialorder %v1467, 0.0
        %vm1584 = vcmp.gt.f32.partialorder %v1470, 0.0
        %vm1585 = vcmp.gt.f32.partialorder %v1472, 0.0
        %vm1586 = vcmp.gt.f32.partialorder %v1475, 0.0
        %vm1587 = vcmp.gt.f32.partialorder %v1477, 0.0
        %vm1588 = vcmp.gt.f32.partialorder %v1480, 0.0
        %vm1589 = vcmp.gt.f32.partialorder %v1482, 0.0
        %vm1590 = vcmp.gt.f32.partialorder %v1485, 0.0
        %vm1591 = vcmp.gt.f32.partialorder %v1487, 0.0
        %vm1592 = vcmp.gt.f32.partialorder %v1490, 0.0
        %vm1593 = vcmp.gt.f32.partialorder %v1492, 0.0
        %vm1594 = vcmp.gt.f32.partialorder %v1495, 0.0
        %vm1595 = vcmp.gt.f32.partialorder %v1497, 0.0
        %vm1596 = vcmp.gt.f32.partialorder %v1500, 0.0
        %vm1597 = vcmp.gt.f32.partialorder %v1502, 0.0
        %vm1598 = vcmp.gt.f32.partialorder %v1505, 0.0
        %vm1599 = vcmp.gt.f32.partialorder %v1507, 0.0
        %vm1600 = vcmp.gt.f32.partialorder %v1510, 0.0
        %vm1601 = vcmp.gt.f32.partialorder %v1512, 0.0
        %vm1602 = vcmp.gt.f32.partialorder %v1515, 0.0
        %vm1603 = vcmp.gt.f32.partialorder %v1517, 0.0
        %vm1604 = vcmp.gt.f32.partialorder %v1520, 0.0
        %vm1605 = vcmp.gt.f32.partialorder %v1522, 0.0
        %vm1606 = vcmp.gt.f32.partialorder %v1525, 0.0
        %vm1607 = vcmp.gt.f32.partialorder %v1527, 0.0
        %vm1608 = vcmp.gt.f32.partialorder %v1530, 0.0
        %vm1609 = vcmp.gt.f32.partialorder %v1532, 0.0
        %vm1610 = vcmp.gt.f32.partialorder %v1535, 0.0
        %vm1611 = vcmp.gt.f32.partialorder %v1537, 0.0
        %vm1612 = vcmp.gt.f32.partialorder %v1540, 0.0
        %vm1613 = vcmp.gt.f32.partialorder %v1542, 0.0
        %vm1614 = vcmp.gt.f32.partialorder %v1545, 0.0
        %vm1615 = vcmp.gt.f32.partialorder %v1547, 0.0
        %vm1616 = vcmp.gt.f32.partialorder %v1550, 0.0
        %vm1617 = vcmp.gt.f32.partialorder %v1552, 0.0
        %v1618 = vmul.f32 %v1395, 0.01
        %v1619 = vmul.f32 %v1397, 0.01
        %v1620 = vmul.f32 %v1400, 0.01
        %v1621 = vmul.f32 %v1402, 0.01
        %v1622 = vmul.f32 %v1405, 0.01
        %v1623 = vmul.f32 %v1407, 0.01
        %v1624 = vmul.f32 %v1410, 0.01
        %v1625 = vmul.f32 %v1412, 0.01
        %v1626 = vmul.f32 %v1415, 0.01
        %v1627 = vmul.f32 %v1417, 0.01
        %v1628 = vmul.f32 %v1420, 0.01
        %v1629 = vmul.f32 %v1422, 0.01
        %v1630 = vmul.f32 %v1425, 0.01
        %v1631 = vmul.f32 %v1427, 0.01
        %v1632 = vmul.f32 %v1430, 0.01
        %v1633 = vmul.f32 %v1432, 0.01
        %v1634 = vmul.f32 %v1435, 0.01
        %v1635 = vmul.f32 %v1437, 0.01
        %v1636 = vmul.f32 %v1440, 0.01
        %v1637 = vmul.f32 %v1442, 0.01
        %v1638 = vmul.f32 %v1445, 0.01
        %v1639 = vmul.f32 %v1447, 0.01
        %v1640 = vmul.f32 %v1450, 0.01
        %v1641 = vmul.f32 %v1452, 0.01
        %v1642 = vmul.f32 %v1455, 0.01
        %v1643 = vmul.f32 %v1457, 0.01
        %v1644 = vmul.f32 %v1460, 0.01
        %v1645 = vmul.f32 %v1462, 0.01
        %v1646 = vmul.f32 %v1465, 0.01
        %v1647 = vmul.f32 %v1467, 0.01
        %v1648 = vmul.f32 %v1470, 0.01
        %v1649 = vmul.f32 %v1472, 0.01
        %v1650 = vmul.f32 %v1475, 0.01
        %v1651 = vmul.f32 %v1477, 0.01
        %v1652 = vmul.f32 %v1480, 0.01
        %v1653 = vmul.f32 %v1482, 0.01
        %v1654 = vmul.f32 %v1485, 0.01
        %v1655 = vmul.f32 %v1487, 0.01
        %v1656 = vmul.f32 %v1490, 0.01
        %v1657 = vmul.f32 %v1492, 0.01
        %v1658 = vmul.f32 %v1495, 0.01
        %v1659 = vmul.f32 %v1497, 0.01
        %v1660 = vmul.f32 %v1500, 0.01
        %v1661 = vmul.f32 %v1502, 0.01
        %v1662 = vmul.f32 %v1505, 0.01
        %v1663 = vmul.f32 %v1507, 0.01
        %v1664 = vmul.f32 %v1510, 0.01
        %v1665 = vmul.f32 %v1512, 0.01
        %v1666 = vmul.f32 %v1515, 0.01
        %v1667 = vmul.f32 %v1517, 0.01
        %v1668 = vmul.f32 %v1520, 0.01
        %v1669 = vmul.f32 %v1522, 0.01
        %v1670 = vmul.f32 %v1525, 0.01
        %v1671 = vmul.f32 %v1527, 0.01
        %v1672 = vmul.f32 %v1530, 0.01
        %v1673 = vmul.f32 %v1532, 0.01
        %v1674 = vmul.f32 %v1535, 0.01
        %v1675 = vmul.f32 %v1537, 0.01
        %v1676 = vmul.f32 %v1540, 0.01
        %v1677 = vmul.f32 %v1542, 0.01
        %v1678 = vmul.f32 %v1545, 0.01
        %v1679 = vmul.f32 %v1547, 0.01
        %v1680 = vmul.f32 %v1550, 0.01
        %v1681 = vmul.f32 %v1552, 0.01
        %v1682 = vsel %vm1554, %v1395, %v1618
        %v1683 = vsel %vm1555, %v1397, %v1619
        %v1684 = vsel %vm1556, %v1400, %v1620
        %v1685 = vsel %vm1557, %v1402, %v1621
        %v1686 = vsel %vm1558, %v1405, %v1622
        %v1687 = vsel %vm1559, %v1407, %v1623
        %v1688 = vsel %vm1560, %v1410, %v1624
        %v1689 = vsel %vm1561, %v1412, %v1625
        %v1690 = vsel %vm1562, %v1415, %v1626
        %v1691 = vsel %vm1563, %v1417, %v1627
        %v1692 = vsel %vm1564, %v1420, %v1628
        %v1693 = vsel %vm1565, %v1422, %v1629
        %v1694 = vsel %vm1566, %v1425, %v1630
        %v1695 = vsel %vm1567, %v1427, %v1631
        %v1696 = vsel %vm1568, %v1430, %v1632
        %v1697 = vsel %vm1569, %v1432, %v1633
        %v1698 = vsel %vm1570, %v1435, %v1634
        %v1699 = vsel %vm1571, %v1437, %v1635
        %v1700 = vsel %vm1572, %v1440, %v1636
        %v1701 = vsel %vm1573, %v1442, %v1637
        %v1702 = vsel %vm1574, %v1445, %v1638
        %v1703 = vsel %vm1575, %v1447, %v1639
        %v1704 = vsel %vm1576, %v1450, %v1640
        %v1705 = vsel %vm1577, %v1452, %v1641
        %v1706 = vsel %vm1578, %v1455, %v1642
        %v1707 = vsel %vm1579, %v1457, %v1643
        %v1708 = vsel %vm1580, %v1460, %v1644
        %v1709 = vsel %vm1581, %v1462, %v1645
        %v1710 = vsel %vm1582, %v1465, %v1646
        %v1711 = vsel %vm1583, %v1467, %v1647
        %v1712 = vsel %vm1584, %v1470, %v1648
        %v1713 = vsel %vm1585, %v1472, %v1649
        %v1714 = vsel %vm1586, %v1475, %v1650
        %v1715 = vsel %vm1587, %v1477, %v1651
        %v1716 = vsel %vm1588, %v1480, %v1652
        %v1717 = vsel %vm1589, %v1482, %v1653
        %v1718 = vsel %vm1590, %v1485, %v1654
        %v1719 = vsel %vm1591, %v1487, %v1655
        %v1720 = vsel %vm1592, %v1490, %v1656
        %v1721 = vsel %vm1593, %v1492, %v1657
        %v1722 = vsel %vm1594, %v1495, %v1658
        %v1723 = vsel %vm1595, %v1497, %v1659
        %v1724 = vsel %vm1596, %v1500, %v1660
        %v1725 = vsel %vm1597, %v1502, %v1661
        %v1726 = vsel %vm1598, %v1505, %v1662
        %v1727 = vsel %vm1599, %v1507, %v1663
        %v1728 = vsel %vm1600, %v1510, %v1664
        %v1729 = vsel %vm1601, %v1512, %v1665
        %v1730 = vsel %vm1602, %v1515, %v1666
        %v1731 = vsel %vm1603, %v1517, %v1667
        %v1732 = vsel %vm1604, %v1520, %v1668
        %v1733 = vsel %vm1605, %v1522, %v1669
        %v1734 = vsel %vm1606, %v1525, %v1670
        %v1735 = vsel %vm1607, %v1527, %v1671
        %v1736 = vsel %vm1608, %v1530, %v1672
        %v1737 = vsel %vm1609, %v1532, %v1673
        %v1738 = vsel %vm1610, %v1535, %v1674
        %v1739 = vsel %vm1611, %v1537, %v1675
        %v1740 = vsel %vm1612, %v1540, %v1676
        %v1741 = vsel %vm1613, %v1542, %v1677
        %v1742 = vsel %vm1614, %v1545, %v1678
        %v1743 = vsel %vm1615, %v1547, %v1679
        %v1744 = vsel %vm1616, %v1550, %v1680
        %v1745 = vsel %vm1617, %v1552, %v1681
        %v1746 = vpack.c.bf16 %v1683, %v1682
        %v1747 = vpack.c.bf16 %v1685, %v1684
        %v1748 = vpack.c.bf16 %v1687, %v1686
        %v1749 = vpack.c.bf16 %v1689, %v1688
        %v1750 = vpack.c.bf16 %v1691, %v1690
        %v1751 = vpack.c.bf16 %v1693, %v1692
        %v1752 = vpack.c.bf16 %v1695, %v1694
        %v1753 = vpack.c.bf16 %v1697, %v1696
        %v1754 = vpack.c.bf16 %v1699, %v1698
        %v1755 = vpack.c.bf16 %v1701, %v1700
        %v1756 = vpack.c.bf16 %v1703, %v1702
        %v1757 = vpack.c.bf16 %v1705, %v1704
        %v1758 = vpack.c.bf16 %v1707, %v1706
        %v1759 = vpack.c.bf16 %v1709, %v1708
        %v1760 = vpack.c.bf16 %v1711, %v1710
        %v1761 = vpack.c.bf16 %v1713, %v1712
        %v1762 = vpack.c.bf16 %v1715, %v1714
        %v1763 = vpack.c.bf16 %v1717, %v1716
        %v1764 = vpack.c.bf16 %v1719, %v1718
        %v1765 = vpack.c.bf16 %v1721, %v1720
        %v1766 = vpack.c.bf16 %v1723, %v1722
        %v1767 = vpack.c.bf16 %v1725, %v1724
        %v1768 = vpack.c.bf16 %v1727, %v1726
        %v1769 = vpack.c.bf16 %v1729, %v1728
        %v1770 = vpack.c.bf16 %v1731, %v1730
        %v1771 = vpack.c.bf16 %v1733, %v1732
        %v1772 = vpack.c.bf16 %v1735, %v1734
        %v1773 = vpack.c.bf16 %v1737, %v1736
        %v1774 = vpack.c.bf16 %v1739, %v1738
        %v1775 = vpack.c.bf16 %v1741, %v1740
        %v1776 = vpack.c.bf16 %v1743, %v1742
        %v1777 = vpack.c.bf16 %v1745, %v1744
        %v1778 = vld [vmem:[%s2] sm:$0xf]
        %v1779 = vld [vmem:[%s2 + $0x4] sm:$0xf]
        %v1780 = vld [vmem:[%s2 + $0x8] sm:$0xf]
        %v1781 = vld [vmem:[%s2 + $0xc] sm:$0xf]
        %v1782 = vld [vmem:[%s2 + $0x10] sm:$0xf]
        %v1783 = vld [vmem:[%s2 + $0x14] sm:$0xf]
        %v1784 = vld [vmem:[%s2 + $0x18] sm:$0xf]
        %v1785 = vld [vmem:[%s2 + $0x1c] sm:$0xf]
        %v1786 = vld [vmem:[%s2 + $0x20] sm:$0xf]
        %v1787 = vld [vmem:[%s2 + $0x24] sm:$0xf]
        %v1788 = vld [vmem:[%s2 + $0x28] sm:$0xf]
        %v1789 = vld [vmem:[%s2 + $0x2c] sm:$0xf]
        %v1790 = vld [vmem:[%s2 + $0x30] sm:$0xf]
        %v1791 = vld [vmem:[%s2 + $0x34] sm:$0xf]
        %v1792 = vld [vmem:[%s2 + $0x38] sm:$0xf]
        %v1793 = vld [vmem:[%s2 + $0x3c] sm:$0xf]
        %v1794 = vld [vmem:[%s3] sm:$0x1]
        %v1796 = vperm.slane %v1794, 0
        %v1814 = vunpack.c.l.b16 %v1778
        %v1815 = vunpack.c.l.b16 %v1779
        %v1816 = vunpack.c.l.b16 %v1780
        %v1817 = vunpack.c.l.b16 %v1781
        %v1818 = vunpack.c.l.b16 %v1782
        %v1819 = vunpack.c.l.b16 %v1783
        %v1820 = vunpack.c.l.b16 %v1784
        %v1821 = vunpack.c.l.b16 %v1785
        %v1822 = vunpack.c.l.b16 %v1786
        %v1823 = vunpack.c.l.b16 %v1787
        %v1824 = vunpack.c.l.b16 %v1788
        %v1825 = vunpack.c.l.b16 %v1789
        %v1826 = vunpack.c.l.b16 %v1790
        %v1827 = vunpack.c.l.b16 %v1791
        %v1828 = vunpack.c.l.b16 %v1792
        %v1829 = vunpack.c.l.b16 %v1793
        %v1830 = vpack.c.b16 %v1815, %v1814
        %v1831 = vpack.c.b16 %v1817, %v1816
        %v1832 = vpack.c.b16 %v1819, %v1818
        %v1833 = vpack.c.b16 %v1821, %v1820
        %v1834 = vpack.c.b16 %v1823, %v1822
        %v1835 = vpack.c.b16 %v1825, %v1824
        %v1836 = vpack.c.b16 %v1827, %v1826
        %v1837 = vpack.c.b16 %v1829, %v1828
        %1846 = vmatpush.bf16.msra.mxu0 %v1837
        %1847 = vmatpush.bf16.msra.mxu0 %v1836
        %1848 = vmatpush.bf16.msra.mxu0 %v1835
        %1849 = vmatpush.bf16.msra.mxu0 %v1834
        %1850 = vmatpush.bf16.msra.mxu0 %v1833
        %1851 = vmatpush.bf16.msra.mxu0 %v1832
        %1852 = vmatpush.bf16.msra.mxu0 %v1831
        %1853 = vmatpush.bf16.msra.mxu0 %v1830
        %1854 = vmatmul.bf16.gmra.mxu0 %v1746
        %v1855 = vpop.f32.mrf.mxu0
        %v1856 = vadd.f32 %v1796, %v1855
        %v1857 = vpop.f32.mrf.mxu0
        %v1858 = vadd.f32 %v1796, %v1857
        %1859 = vmatmul.bf16.gmra.mxu0 %v1747
        %v1860 = vpop.f32.mrf.mxu0
        %v1861 = vadd.f32 %v1796, %v1860
        %v1862 = vpop.f32.mrf.mxu0
        %v1863 = vadd.f32 %v1796, %v1862
        %1864 = vmatmul.bf16.gmra.mxu0 %v1748
        %v1865 = vpop.f32.mrf.mxu0
        %v1866 = vadd.f32 %v1796, %v1865
        %v1867 = vpop.f32.mrf.mxu0
        %v1868 = vadd.f32 %v1796, %v1867
        %1869 = vmatmul.bf16.gmra.mxu0 %v1749
        %v1870 = vpop.f32.mrf.mxu0
        %v1871 = vadd.f32 %v1796, %v1870
        %v1872 = vpop.f32.mrf.mxu0
        %v1873 = vadd.f32 %v1796, %v1872
        %1874 = vmatmul.bf16.gmra.mxu0 %v1750
        %v1875 = vpop.f32.mrf.mxu0
        %v1876 = vadd.f32 %v1796, %v1875
        %v1877 = vpop.f32.mrf.mxu0
        %v1878 = vadd.f32 %v1796, %v1877
        %1879 = vmatmul.bf16.gmra.mxu0 %v1751
        %v1880 = vpop.f32.mrf.mxu0
        %v1881 = vadd.f32 %v1796, %v1880
        %v1882 = vpop.f32.mrf.mxu0
        %v1883 = vadd.f32 %v1796, %v1882
        %1884 = vmatmul.bf16.gmra.mxu0 %v1752
        %v1885 = vpop.f32.mrf.mxu0
        %v1886 = vadd.f32 %v1796, %v1885
        %v1887 = vpop.f32.mrf.mxu0
        %v1888 = vadd.f32 %v1796, %v1887
        %1889 = vmatmul.bf16.gmra.mxu0 %v1753
        %v1890 = vpop.f32.mrf.mxu0
        %v1891 = vadd.f32 %v1796, %v1890
        %v1892 = vpop.f32.mrf.mxu0
        %v1893 = vadd.f32 %v1796, %v1892
        %1894 = vmatmul.bf16.gmra.mxu0 %v1754
        %v1895 = vpop.f32.mrf.mxu0
        %v1896 = vadd.f32 %v1796, %v1895
        %v1897 = vpop.f32.mrf.mxu0
        %v1898 = vadd.f32 %v1796, %v1897
        %1899 = vmatmul.bf16.gmra.mxu0 %v1755
        %v1900 = vpop.f32.mrf.mxu0
        %v1901 = vadd.f32 %v1796, %v1900
        %v1902 = vpop.f32.mrf.mxu0
        %v1903 = vadd.f32 %v1796, %v1902
        %1904 = vmatmul.bf16.gmra.mxu0 %v1756
        %v1905 = vpop.f32.mrf.mxu0
        %v1906 = vadd.f32 %v1796, %v1905
        %v1907 = vpop.f32.mrf.mxu0
        %v1908 = vadd.f32 %v1796, %v1907
        %1909 = vmatmul.bf16.gmra.mxu0 %v1757
        %v1910 = vpop.f32.mrf.mxu0
        %v1911 = vadd.f32 %v1796, %v1910
        %v1912 = vpop.f32.mrf.mxu0
        %v1913 = vadd.f32 %v1796, %v1912
        %1914 = vmatmul.bf16.gmra.mxu0 %v1758
        %v1915 = vpop.f32.mrf.mxu0
        %v1916 = vadd.f32 %v1796, %v1915
        %v1917 = vpop.f32.mrf.mxu0
        %v1918 = vadd.f32 %v1796, %v1917
        %1919 = vmatmul.bf16.gmra.mxu0 %v1759
        %v1920 = vpop.f32.mrf.mxu0
        %v1921 = vadd.f32 %v1796, %v1920
        %v1922 = vpop.f32.mrf.mxu0
        %v1923 = vadd.f32 %v1796, %v1922
        %1924 = vmatmul.bf16.gmra.mxu0 %v1760
        %v1925 = vpop.f32.mrf.mxu0
        %v1926 = vadd.f32 %v1796, %v1925
        %v1927 = vpop.f32.mrf.mxu0
        %v1928 = vadd.f32 %v1796, %v1927
        %1929 = vmatmul.bf16.gmra.mxu0 %v1761
        %v1930 = vpop.f32.mrf.mxu0
        %v1931 = vadd.f32 %v1796, %v1930
        %v1932 = vpop.f32.mrf.mxu0
        %v1933 = vadd.f32 %v1796, %v1932
        %1934 = vmatmul.bf16.gmra.mxu0 %v1762
        %v1935 = vpop.f32.mrf.mxu0
        %v1936 = vadd.f32 %v1796, %v1935
        %v1937 = vpop.f32.mrf.mxu0
        %v1938 = vadd.f32 %v1796, %v1937
        %1939 = vmatmul.bf16.gmra.mxu0 %v1763
        %v1940 = vpop.f32.mrf.mxu0
        %v1941 = vadd.f32 %v1796, %v1940
        %v1942 = vpop.f32.mrf.mxu0
        %v1943 = vadd.f32 %v1796, %v1942
        %1944 = vmatmul.bf16.gmra.mxu0 %v1764
        %v1945 = vpop.f32.mrf.mxu0
        %v1946 = vadd.f32 %v1796, %v1945
        %v1947 = vpop.f32.mrf.mxu0
        %v1948 = vadd.f32 %v1796, %v1947
        %1949 = vmatmul.bf16.gmra.mxu0 %v1765
        %v1950 = vpop.f32.mrf.mxu0
        %v1951 = vadd.f32 %v1796, %v1950
        %v1952 = vpop.f32.mrf.mxu0
        %v1953 = vadd.f32 %v1796, %v1952
        %1954 = vmatmul.bf16.gmra.mxu0 %v1766
        %v1955 = vpop.f32.mrf.mxu0
        %v1956 = vadd.f32 %v1796, %v1955
        %v1957 = vpop.f32.mrf.mxu0
        %v1958 = vadd.f32 %v1796, %v1957
        %1959 = vmatmul.bf16.gmra.mxu0 %v1767
        %v1960 = vpop.f32.mrf.mxu0
        %v1961 = vadd.f32 %v1796, %v1960
        %v1962 = vpop.f32.mrf.mxu0
        %v1963 = vadd.f32 %v1796, %v1962
        %1964 = vmatmul.bf16.gmra.mxu0 %v1768
        %v1965 = vpop.f32.mrf.mxu0
        %v1966 = vadd.f32 %v1796, %v1965
        %v1967 = vpop.f32.mrf.mxu0
        %v1968 = vadd.f32 %v1796, %v1967
        %1969 = vmatmul.bf16.gmra.mxu0 %v1769
        %v1970 = vpop.f32.mrf.mxu0
        %v1971 = vadd.f32 %v1796, %v1970
        %v1972 = vpop.f32.mrf.mxu0
        %v1973 = vadd.f32 %v1796, %v1972
        %1974 = vmatmul.bf16.gmra.mxu0 %v1770
        %v1975 = vpop.f32.mrf.mxu0
        %v1976 = vadd.f32 %v1796, %v1975
        %v1977 = vpop.f32.mrf.mxu0
        %v1978 = vadd.f32 %v1796, %v1977
        %1979 = vmatmul.bf16.gmra.mxu0 %v1771
        %v1980 = vpop.f32.mrf.mxu0
        %v1981 = vadd.f32 %v1796, %v1980
        %v1982 = vpop.f32.mrf.mxu0
        %v1983 = vadd.f32 %v1796, %v1982
        %1984 = vmatmul.bf16.gmra.mxu0 %v1772
        %v1985 = vpop.f32.mrf.mxu0
        %v1986 = vadd.f32 %v1796, %v1985
        %v1987 = vpop.f32.mrf.mxu0
        %v1988 = vadd.f32 %v1796, %v1987
        %1989 = vmatmul.bf16.gmra.mxu0 %v1773
        %v1990 = vpop.f32.mrf.mxu0
        %v1991 = vadd.f32 %v1796, %v1990
        %v1992 = vpop.f32.mrf.mxu0
        %v1993 = vadd.f32 %v1796, %v1992
        %1994 = vmatmul.bf16.gmra.mxu0 %v1774
        %v1995 = vpop.f32.mrf.mxu0
        %v1996 = vadd.f32 %v1796, %v1995
        %v1997 = vpop.f32.mrf.mxu0
        %v1998 = vadd.f32 %v1796, %v1997
        %1999 = vmatmul.bf16.gmra.mxu0 %v1775
        %v2000 = vpop.f32.mrf.mxu0
        %v2001 = vadd.f32 %v1796, %v2000
        %v2002 = vpop.f32.mrf.mxu0
        %v2003 = vadd.f32 %v1796, %v2002
        %2004 = vmatmul.bf16.gmra.mxu0 %v1776
        %v2005 = vpop.f32.mrf.mxu0
        %v2006 = vadd.f32 %v1796, %v2005
        %v2007 = vpop.f32.mrf.mxu0
        %v2008 = vadd.f32 %v1796, %v2007
        %2009 = vmatmul.bf16.gmra.mxu0 %v1777
        %v2010 = vpop.f32.mrf.mxu0
        %v2011 = vadd.f32 %v1796, %v2010
        %v2012 = vpop.f32.mrf.mxu0
        %v2013 = vadd.f32 %v1796, %v2012
        %2014 = vdwg.mxu0
        %vm2015 = vcmp.gt.f32.partialorder %v1856, 0.0
        %vm2016 = vcmp.gt.f32.partialorder %v1858, 0.0
        %vm2017 = vcmp.gt.f32.partialorder %v1861, 0.0
        %vm2018 = vcmp.gt.f32.partialorder %v1863, 0.0
        %vm2019 = vcmp.gt.f32.partialorder %v1866, 0.0
        %vm2020 = vcmp.gt.f32.partialorder %v1868, 0.0
        %vm2021 = vcmp.gt.f32.partialorder %v1871, 0.0
        %vm2022 = vcmp.gt.f32.partialorder %v1873, 0.0
        %vm2023 = vcmp.gt.f32.partialorder %v1876, 0.0
        %vm2024 = vcmp.gt.f32.partialorder %v1878, 0.0
        %vm2025 = vcmp.gt.f32.partialorder %v1881, 0.0
        %vm2026 = vcmp.gt.f32.partialorder %v1883, 0.0
        %vm2027 = vcmp.gt.f32.partialorder %v1886, 0.0
        %vm2028 = vcmp.gt.f32.partialorder %v1888, 0.0
        %vm2029 = vcmp.gt.f32.partialorder %v1891, 0.0
        %vm2030 = vcmp.gt.f32.partialorder %v1893, 0.0
        %vm2031 = vcmp.gt.f32.partialorder %v1896, 0.0
        %vm2032 = vcmp.gt.f32.partialorder %v1898, 0.0
        %vm2033 = vcmp.gt.f32.partialorder %v1901, 0.0
        %vm2034 = vcmp.gt.f32.partialorder %v1903, 0.0
        %vm2035 = vcmp.gt.f32.partialorder %v1906, 0.0
        %vm2036 = vcmp.gt.f32.partialorder %v1908, 0.0
        %vm2037 = vcmp.gt.f32.partialorder %v1911, 0.0
        %vm2038 = vcmp.gt.f32.partialorder %v1913, 0.0
        %vm2039 = vcmp.gt.f32.partialorder %v1916, 0.0
        %vm2040 = vcmp.gt.f32.partialorder %v1918, 0.0
        %vm2041 = vcmp.gt.f32.partialorder %v1921, 0.0
        %vm2042 = vcmp.gt.f32.partialorder %v1923, 0.0
        %vm2043 = vcmp.gt.f32.partialorder %v1926, 0.0
        %vm2044 = vcmp.gt.f32.partialorder %v1928, 0.0
        %vm2045 = vcmp.gt.f32.partialorder %v1931, 0.0
        %vm2046 = vcmp.gt.f32.partialorder %v1933, 0.0
        %vm2047 = vcmp.gt.f32.partialorder %v1936, 0.0
        %vm2048 = vcmp.gt.f32.partialorder %v1938, 0.0
        %vm2049 = vcmp.gt.f32.partialorder %v1941, 0.0
        %vm2050 = vcmp.gt.f32.partialorder %v1943, 0.0
        %vm2051 = vcmp.gt.f32.partialorder %v1946, 0.0
        %vm2052 = vcmp.gt.f32.partialorder %v1948, 0.0
        %vm2053 = vcmp.gt.f32.partialorder %v1951, 0.0
        %vm2054 = vcmp.gt.f32.partialorder %v1953, 0.0
        %vm2055 = vcmp.gt.f32.partialorder %v1956, 0.0
        %vm2056 = vcmp.gt.f32.partialorder %v1958, 0.0
        %vm2057 = vcmp.gt.f32.partialorder %v1961, 0.0
        %vm2058 = vcmp.gt.f32.partialorder %v1963, 0.0
        %vm2059 = vcmp.gt.f32.partialorder %v1966, 0.0
        %vm2060 = vcmp.gt.f32.partialorder %v1968, 0.0
        %vm2061 = vcmp.gt.f32.partialorder %v1971, 0.0
        %vm2062 = vcmp.gt.f32.partialorder %v1973, 0.0
        %vm2063 = vcmp.gt.f32.partialorder %v1976, 0.0
        %vm2064 = vcmp.gt.f32.partialorder %v1978, 0.0
        %vm2065 = vcmp.gt.f32.partialorder %v1981, 0.0
        %vm2066 = vcmp.gt.f32.partialorder %v1983, 0.0
        %vm2067 = vcmp.gt.f32.partialorder %v1986, 0.0
        %vm2068 = vcmp.gt.f32.partialorder %v1988, 0.0
        %vm2069 = vcmp.gt.f32.partialorder %v1991, 0.0
        %vm2070 = vcmp.gt.f32.partialorder %v1993, 0.0
        %vm2071 = vcmp.gt.f32.partialorder %v1996, 0.0
        %vm2072 = vcmp.gt.f32.partialorder %v1998, 0.0
        %vm2073 = vcmp.gt.f32.partialorder %v2001, 0.0
        %vm2074 = vcmp.gt.f32.partialorder %v2003, 0.0
        %vm2075 = vcmp.gt.f32.partialorder %v2006, 0.0
        %vm2076 = vcmp.gt.f32.partialorder %v2008, 0.0
        %vm2077 = vcmp.gt.f32.partialorder %v2011, 0.0
        %vm2078 = vcmp.gt.f32.partialorder %v2013, 0.0
        %v2079 = vmul.f32 %v1856, 0.01
        %v2080 = vmul.f32 %v1858, 0.01
        %v2081 = vmul.f32 %v1861, 0.01
        %v2082 = vmul.f32 %v1863, 0.01
        %v2083 = vmul.f32 %v1866, 0.01
        %v2084 = vmul.f32 %v1868, 0.01
        %v2085 = vmul.f32 %v1871, 0.01
        %v2086 = vmul.f32 %v1873, 0.01
        %v2087 = vmul.f32 %v1876, 0.01
        %v2088 = vmul.f32 %v1878, 0.01
        %v2089 = vmul.f32 %v1881, 0.01
        %v2090 = vmul.f32 %v1883, 0.01
        %v2091 = vmul.f32 %v1886, 0.01
        %v2092 = vmul.f32 %v1888, 0.01
        %v2093 = vmul.f32 %v1891, 0.01
        %v2094 = vmul.f32 %v1893, 0.01
        %v2095 = vmul.f32 %v1896, 0.01
        %v2096 = vmul.f32 %v1898, 0.01
        %v2097 = vmul.f32 %v1901, 0.01
        %v2098 = vmul.f32 %v1903, 0.01
        %v2099 = vmul.f32 %v1906, 0.01
        %v2100 = vmul.f32 %v1908, 0.01
        %v2101 = vmul.f32 %v1911, 0.01
        %v2102 = vmul.f32 %v1913, 0.01
        %v2103 = vmul.f32 %v1916, 0.01
        %v2104 = vmul.f32 %v1918, 0.01
        %v2105 = vmul.f32 %v1921, 0.01
        %v2106 = vmul.f32 %v1923, 0.01
        %v2107 = vmul.f32 %v1926, 0.01
        %v2108 = vmul.f32 %v1928, 0.01
        %v2109 = vmul.f32 %v1931, 0.01
        %v2110 = vmul.f32 %v1933, 0.01
        %v2111 = vmul.f32 %v1936, 0.01
        %v2112 = vmul.f32 %v1938, 0.01
        %v2113 = vmul.f32 %v1941, 0.01
        %v2114 = vmul.f32 %v1943, 0.01
        %v2115 = vmul.f32 %v1946, 0.01
        %v2116 = vmul.f32 %v1948, 0.01
        %v2117 = vmul.f32 %v1951, 0.01
        %v2118 = vmul.f32 %v1953, 0.01
        %v2119 = vmul.f32 %v1956, 0.01
        %v2120 = vmul.f32 %v1958, 0.01
        %v2121 = vmul.f32 %v1961, 0.01
        %v2122 = vmul.f32 %v1963, 0.01
        %v2123 = vmul.f32 %v1966, 0.01
        %v2124 = vmul.f32 %v1968, 0.01
        %v2125 = vmul.f32 %v1971, 0.01
        %v2126 = vmul.f32 %v1973, 0.01
        %v2127 = vmul.f32 %v1976, 0.01
        %v2128 = vmul.f32 %v1978, 0.01
        %v2129 = vmul.f32 %v1981, 0.01
        %v2130 = vmul.f32 %v1983, 0.01
        %v2131 = vmul.f32 %v1986, 0.01
        %v2132 = vmul.f32 %v1988, 0.01
        %v2133 = vmul.f32 %v1991, 0.01
        %v2134 = vmul.f32 %v1993, 0.01
        %v2135 = vmul.f32 %v1996, 0.01
        %v2136 = vmul.f32 %v1998, 0.01
        %v2137 = vmul.f32 %v2001, 0.01
        %v2138 = vmul.f32 %v2003, 0.01
        %v2139 = vmul.f32 %v2006, 0.01
        %v2140 = vmul.f32 %v2008, 0.01
        %v2141 = vmul.f32 %v2011, 0.01
        %v2142 = vmul.f32 %v2013, 0.01
        %v2143 = vsel %vm2015, %v1856, %v2079
        %v2144 = vsel %vm2016, %v1858, %v2080
        %v2145 = vsel %vm2017, %v1861, %v2081
        %v2146 = vsel %vm2018, %v1863, %v2082
        %v2147 = vsel %vm2019, %v1866, %v2083
        %v2148 = vsel %vm2020, %v1868, %v2084
        %v2149 = vsel %vm2021, %v1871, %v2085
        %v2150 = vsel %vm2022, %v1873, %v2086
        %v2151 = vsel %vm2023, %v1876, %v2087
        %v2152 = vsel %vm2024, %v1878, %v2088
        %v2153 = vsel %vm2025, %v1881, %v2089
        %v2154 = vsel %vm2026, %v1883, %v2090
        %v2155 = vsel %vm2027, %v1886, %v2091
        %v2156 = vsel %vm2028, %v1888, %v2092
        %v2157 = vsel %vm2029, %v1891, %v2093
        %v2158 = vsel %vm2030, %v1893, %v2094
        %v2159 = vsel %vm2031, %v1896, %v2095
        %v2160 = vsel %vm2032, %v1898, %v2096
        %v2161 = vsel %vm2033, %v1901, %v2097
        %v2162 = vsel %vm2034, %v1903, %v2098
        %v2163 = vsel %vm2035, %v1906, %v2099
        %v2164 = vsel %vm2036, %v1908, %v2100
        %v2165 = vsel %vm2037, %v1911, %v2101
        %v2166 = vsel %vm2038, %v1913, %v2102
        %v2167 = vsel %vm2039, %v1916, %v2103
        %v2168 = vsel %vm2040, %v1918, %v2104
        %v2169 = vsel %vm2041, %v1921, %v2105
        %v2170 = vsel %vm2042, %v1923, %v2106
        %v2171 = vsel %vm2043, %v1926, %v2107
        %v2172 = vsel %vm2044, %v1928, %v2108
        %v2173 = vsel %vm2045, %v1931, %v2109
        %v2174 = vsel %vm2046, %v1933, %v2110
        %v2175 = vsel %vm2047, %v1936, %v2111
        %v2176 = vsel %vm2048, %v1938, %v2112
        %v2177 = vsel %vm2049, %v1941, %v2113
        %v2178 = vsel %vm2050, %v1943, %v2114
        %v2179 = vsel %vm2051, %v1946, %v2115
        %v2180 = vsel %vm2052, %v1948, %v2116
        %v2181 = vsel %vm2053, %v1951, %v2117
        %v2182 = vsel %vm2054, %v1953, %v2118
        %v2183 = vsel %vm2055, %v1956, %v2119
        %v2184 = vsel %vm2056, %v1958, %v2120
        %v2185 = vsel %vm2057, %v1961, %v2121
        %v2186 = vsel %vm2058, %v1963, %v2122
        %v2187 = vsel %vm2059, %v1966, %v2123
        %v2188 = vsel %vm2060, %v1968, %v2124
        %v2189 = vsel %vm2061, %v1971, %v2125
        %v2190 = vsel %vm2062, %v1973, %v2126
        %v2191 = vsel %vm2063, %v1976, %v2127
        %v2192 = vsel %vm2064, %v1978, %v2128
        %v2193 = vsel %vm2065, %v1981, %v2129
        %v2194 = vsel %vm2066, %v1983, %v2130
        %v2195 = vsel %vm2067, %v1986, %v2131
        %v2196 = vsel %vm2068, %v1988, %v2132
        %v2197 = vsel %vm2069, %v1991, %v2133
        %v2198 = vsel %vm2070, %v1993, %v2134
        %v2199 = vsel %vm2071, %v1996, %v2135
        %v2200 = vsel %vm2072, %v1998, %v2136
        %v2201 = vsel %vm2073, %v2001, %v2137
        %v2202 = vsel %vm2074, %v2003, %v2138
        %v2203 = vsel %vm2075, %v2006, %v2139
        %v2204 = vsel %vm2076, %v2008, %v2140
        %v2205 = vsel %vm2077, %v2011, %v2141
        %v2206 = vsel %vm2078, %v2013, %v2142
        %v2207 = vpack.c.bf16 %v2143, %v2143
        %v2208 = vpack.c.bf16 %v2144, %v2144
        %v2209 = vpack.c.bf16 %v2145, %v2145
        %v2210 = vpack.c.bf16 %v2146, %v2146
        %v2211 = vpack.c.bf16 %v2147, %v2147
        %v2212 = vpack.c.bf16 %v2148, %v2148
        %v2213 = vpack.c.bf16 %v2149, %v2149
        %v2214 = vpack.c.bf16 %v2150, %v2150
        %v2215 = vpack.c.bf16 %v2151, %v2151
        %v2216 = vpack.c.bf16 %v2152, %v2152
        %v2217 = vpack.c.bf16 %v2153, %v2153
        %v2218 = vpack.c.bf16 %v2154, %v2154
        %v2219 = vpack.c.bf16 %v2155, %v2155
        %v2220 = vpack.c.bf16 %v2156, %v2156
        %v2221 = vpack.c.bf16 %v2157, %v2157
        %v2222 = vpack.c.bf16 %v2158, %v2158
        %v2223 = vpack.c.bf16 %v2159, %v2159
        %v2224 = vpack.c.bf16 %v2160, %v2160
        %v2225 = vpack.c.bf16 %v2161, %v2161
        %v2226 = vpack.c.bf16 %v2162, %v2162
        %v2227 = vpack.c.bf16 %v2163, %v2163
        %v2228 = vpack.c.bf16 %v2164, %v2164
        %v2229 = vpack.c.bf16 %v2165, %v2165
        %v2230 = vpack.c.bf16 %v2166, %v2166
        %v2231 = vpack.c.bf16 %v2167, %v2167
        %v2232 = vpack.c.bf16 %v2168, %v2168
        %v2233 = vpack.c.bf16 %v2169, %v2169
        %v2234 = vpack.c.bf16 %v2170, %v2170
        %v2235 = vpack.c.bf16 %v2171, %v2171
        %v2236 = vpack.c.bf16 %v2172, %v2172
        %v2237 = vpack.c.bf16 %v2173, %v2173
        %v2238 = vpack.c.bf16 %v2174, %v2174
        %v2239 = vpack.c.bf16 %v2175, %v2175
        %v2240 = vpack.c.bf16 %v2176, %v2176
        %v2241 = vpack.c.bf16 %v2177, %v2177
        %v2242 = vpack.c.bf16 %v2178, %v2178
        %v2243 = vpack.c.bf16 %v2179, %v2179
        %v2244 = vpack.c.bf16 %v2180, %v2180
        %v2245 = vpack.c.bf16 %v2181, %v2181
        %v2246 = vpack.c.bf16 %v2182, %v2182
        %v2247 = vpack.c.bf16 %v2183, %v2183
        %v2248 = vpack.c.bf16 %v2184, %v2184
        %v2249 = vpack.c.bf16 %v2185, %v2185
        %v2250 = vpack.c.bf16 %v2186, %v2186
        %v2251 = vpack.c.bf16 %v2187, %v2187
        %v2252 = vpack.c.bf16 %v2188, %v2188
        %v2253 = vpack.c.bf16 %v2189, %v2189
        %v2254 = vpack.c.bf16 %v2190, %v2190
        %v2255 = vpack.c.bf16 %v2191, %v2191
        %v2256 = vpack.c.bf16 %v2192, %v2192
        %v2257 = vpack.c.bf16 %v2193, %v2193
        %v2258 = vpack.c.bf16 %v2194, %v2194
        %v2259 = vpack.c.bf16 %v2195, %v2195
        %v2260 = vpack.c.bf16 %v2196, %v2196
        %v2261 = vpack.c.bf16 %v2197, %v2197
        %v2262 = vpack.c.bf16 %v2198, %v2198
        %v2263 = vpack.c.bf16 %v2199, %v2199
        %v2264 = vpack.c.bf16 %v2200, %v2200
        %v2265 = vpack.c.bf16 %v2201, %v2201
        %v2266 = vpack.c.bf16 %v2202, %v2202
        %v2267 = vpack.c.bf16 %v2203, %v2203
        %v2268 = vpack.c.bf16 %v2204, %v2204
        %v2269 = vpack.c.bf16 %v2205, %v2205
        %v2270 = vpack.c.bf16 %v2206, %v2206
        %2271 = vst [vmem:[%s191] sm:$0xf] %v2207
        %2272 = vst [vmem:[%s191 + $0x4] sm:$0xf] %v2208
        %2273 = vst [vmem:[%s191 + $0x8] sm:$0xf] %v2209
        %2274 = vst [vmem:[%s191 + $0xc] sm:$0xf] %v2210
        %2275 = vst [vmem:[%s191 + $0x10] sm:$0xf] %v2211
        %2276 = vst [vmem:[%s191 + $0x14] sm:$0xf] %v2212
        %2277 = vst [vmem:[%s191 + $0x18] sm:$0xf] %v2213
        %2278 = vst [vmem:[%s191 + $0x1c] sm:$0xf] %v2214
        %2279 = vst [vmem:[%s191 + $0x20] sm:$0xf] %v2215
        %2280 = vst [vmem:[%s191 + $0x24] sm:$0xf] %v2216
        %2281 = vst [vmem:[%s191 + $0x28] sm:$0xf] %v2217
        %2282 = vst [vmem:[%s191 + $0x2c] sm:$0xf] %v2218
        %2283 = vst [vmem:[%s191 + $0x30] sm:$0xf] %v2219
        %2284 = vst [vmem:[%s191 + $0x34] sm:$0xf] %v2220
        %2285 = vst [vmem:[%s191 + $0x38] sm:$0xf] %v2221
        %2286 = vst [vmem:[%s191 + $0x3c] sm:$0xf] %v2222
        %2287 = vst [vmem:[%s191 + $0x40] sm:$0xf] %v2223
        %2288 = vst [vmem:[%s191 + $0x44] sm:$0xf] %v2224
        %2289 = vst [vmem:[%s191 + $0x48] sm:$0xf] %v2225
        %2290 = vst [vmem:[%s191 + $0x4c] sm:$0xf] %v2226
        %2291 = vst [vmem:[%s191 + $0x50] sm:$0xf] %v2227
        %2292 = vst [vmem:[%s191 + $0x54] sm:$0xf] %v2228
        %2293 = vst [vmem:[%s191 + $0x58] sm:$0xf] %v2229
        %2294 = vst [vmem:[%s191 + $0x5c] sm:$0xf] %v2230
        %2295 = vst [vmem:[%s191 + $0x60] sm:$0xf] %v2231
        %2296 = vst [vmem:[%s191 + $0x64] sm:$0xf] %v2232
        %2297 = vst [vmem:[%s191 + $0x68] sm:$0xf] %v2233
        %2298 = vst [vmem:[%s191 + $0x6c] sm:$0xf] %v2234
        %2299 = vst [vmem:[%s191 + $0x70] sm:$0xf] %v2235
        %2300 = vst [vmem:[%s191 + $0x74] sm:$0xf] %v2236
        %2301 = vst [vmem:[%s191 + $0x78] sm:$0xf] %v2237
        %2302 = vst [vmem:[%s191 + $0x7c] sm:$0xf] %v2238
        %2303 = vst [vmem:[%s191 + $0x80] sm:$0xf] %v2239
        %2304 = vst [vmem:[%s191 + $0x84] sm:$0xf] %v2240
        %2305 = vst [vmem:[%s191 + $0x88] sm:$0xf] %v2241
        %2306 = vst [vmem:[%s191 + $0x8c] sm:$0xf] %v2242
        %2307 = vst [vmem:[%s191 + $0x90] sm:$0xf] %v2243
        %2308 = vst [vmem:[%s191 + $0x94] sm:$0xf] %v2244
        %2309 = vst [vmem:[%s191 + $0x98] sm:$0xf] %v2245
        %2310 = vst [vmem:[%s191 + $0x9c] sm:$0xf] %v2246
        %2311 = vst [vmem:[%s191 + $0xa0] sm:$0xf] %v2247
        %2312 = vst [vmem:[%s191 + $0xa4] sm:$0xf] %v2248
        %2313 = vst [vmem:[%s191 + $0xa8] sm:$0xf] %v2249
        %2314 = vst [vmem:[%s191 + $0xac] sm:$0xf] %v2250
        %2315 = vst [vmem:[%s191 + $0xb0] sm:$0xf] %v2251
        %2316 = vst [vmem:[%s191 + $0xb4] sm:$0xf] %v2252
        %2317 = vst [vmem:[%s191 + $0xb8] sm:$0xf] %v2253
        %2318 = vst [vmem:[%s191 + $0xbc] sm:$0xf] %v2254
        %2319 = vst [vmem:[%s191 + $0xc0] sm:$0xf] %v2255
        %2320 = vst [vmem:[%s191 + $0xc4] sm:$0xf] %v2256
        %2321 = vst [vmem:[%s191 + $0xc8] sm:$0xf] %v2257
        %2322 = vst [vmem:[%s191 + $0xcc] sm:$0xf] %v2258
        %2323 = vst [vmem:[%s191 + $0xd0] sm:$0xf] %v2259
        %2324 = vst [vmem:[%s191 + $0xd4] sm:$0xf] %v2260
        %2325 = vst [vmem:[%s191 + $0xd8] sm:$0xf] %v2261
        %2326 = vst [vmem:[%s191 + $0xdc] sm:$0xf] %v2262
        %2327 = vst [vmem:[%s191 + $0xe0] sm:$0xf] %v2263
        %2328 = vst [vmem:[%s191 + $0xe4] sm:$0xf] %v2264
        %2329 = vst [vmem:[%s191 + $0xe8] sm:$0xf] %v2265
        %2330 = vst [vmem:[%s191 + $0xec] sm:$0xf] %v2266
        %2331 = vst [vmem:[%s191 + $0xf0] sm:$0xf] %v2267
        %2332 = vst [vmem:[%s191 + $0xf4] sm:$0xf] %v2268
        %2333 = vst [vmem:[%s191 + $0xf8] sm:$0xf] %v2269
        %2334 = vst [vmem:[%s191 + $0xfc] sm:$0xf] %v2270
        %s2335 = sand.u32 %s115, 1
        %s2336 = scalar_lea.sflag [#allocation3], %s2335
        %s2337 = sand.u32 %s115, 1
        %s2338 = smul.addr %s2337, 256
        %s2339 = scalar_lea.vmem [#allocation2], %s2338
        // Predicated region
        $region37: #{tpu_custom_call.1} parent=35 // pred_check
          %p2340 = pneg %p125
        $region38: #{tpu_custom_call.1} parent=35 // pred_check_branch
          %2342 = sbr.rel (%p2340) target = $region40
        $region39: #{tpu_custom_call.1} parent=35 // pred_region
          %s2343 = smul.u32 64, %s18
          %2345 = vsyncadd %s2336, 0
          %s2346 = smul.addr %s2343, 4
          %s2347 = scalar_lea.hbm %s4, %s2346
          %s2348 = sshll.u32 %s2339, 4
          %s2349 = int_to_ptr.vmem [resolvable:$true] %s2348
          %s2350 = sshll.u32 %s2347, 4
          %s2351 = int_to_ptr.hbm [resolvable:$true] %s2350
          %2356 = dma.vmem_to_hbm [thread:$0]  %s2349, 4096, %s2351, %s2336, 64, 64, 4
        $region40: #{tpu_custom_call.1} parent=35 // pred_fallthru
          _
      $region36: #{tpu_custom_call.1} parent=5 // pred_fallthru
        _
      %p2357 = scmp.le.s32.totalorder 2, %s13
      // Predicated region
      $region41: #{tpu_custom_call.1} parent=5 // pred_check
        %p2358 = pneg %p2357
      $region42: #{tpu_custom_call.1} parent=5 // pred_check_branch
        %2360 = sbr.rel (%p2358) target = $region44
      $region43: #{tpu_custom_call.1} parent=5 // pred_region
        %s2361 = ssub.s32 %s13, 2
        // Predicated region
        $region45: #{tpu_custom_call.1} parent=43 // pred_check
          %p2362 = pneg %p131
        $region46: #{tpu_custom_call.1} parent=43 // pred_check_branch
          %2364 = sbr.rel (%p2362) target = $region48
        $region47: #{tpu_custom_call.1} parent=43 // pred_region
          %s2365 = sand.u32 %s116, 1
          %s2366 = scalar_lea.sflag [#allocation3], %s2365
          %s2367 = sand.u32 %s116, 1
          %s2368 = smul.addr %s2367, 256
          %s2369 = scalar_lea.vmem [#allocation2], %s2368
          %2371 = dma.done %s2366, 4096
        $region48: #{tpu_custom_call.1} parent=43 // pred_fallthru
          _
      $region44: #{tpu_custom_call.1} parent=5 // pred_fallthru
        _
    $region6: #{tpu_custom_call.1} parent=1 // loop_footer
      %s17 = sadd.s32 1, %s13
    $region7: #{tpu_custom_call.1} parent=1 // loop_footer_branch
      %12 = sbr.rel target = $region3
    $region8: #{tpu_custom_call.1} parent=1 // loop_exit
      _
    %2372 = vsyncpa [#allocation3], 1
    %s2373 = scalar_lea.sflag [#allocation3], 1
    %2374 = vsyncpa %s2373, 1

</llo_original>
